<compile_context>
chip_gen: v7x
topology: tpu7x:2x2x1
jax: 0.10.0
libtpu: 0.0.40
codegen_flags: <defaults>
</compile_context>

<pallas_src>
import functools

import jax
import jax.numpy as jnp
from jax import lax
from jax.experimental import pallas as pl
from jax.experimental.pallas import tpu as pltpu

# ----------------------------- configuration --------------------------------
BATCH      = 2
SEQ        = 16                  # T (temporal "points")
FEAT_DIM   = 64                  # feat_dim  (torch default 512, shrunk)
H_DIM      = 32                  # h_dim_1d  (torch default 128, shrunk)
N_WAY      = 5
K_NEIGH    = 3                   # num_neighbors
BB1_GROUPS = 4                   # groups of first backbone Conv1d
GCN_GROUPS = 8                   # gcn_groups (torch default 32, shrunk)
WIDTH      = 4 * GCN_GROUPS      # width_group(=4) * groups


# ------------------------------ fused Pallas kernel --------------------------
def _stgcn_kernel(
    x_ref,                       # (BT, FEAT)   input rows, ordered b*T + t
    sd_ref, su_ref,              # (BT, BT)     shift-to-previous / shift-to-next
    bmask_ref,                   # (BT, BT)     1.0 where rows share a batch
    avg_ref,                     # (B, BT)      mean-over-time matrix (1/T blocks)
    bb_w_ref, bb_b_ref,          # (3, FEAT, H), (1, H)   backbone grouped k=3 conv
    t1_w_ref, t1_b_ref,          # (H, W), (1, W)
    t2_w_ref, t2_b_ref,          # (3, W, W), (1, W)      tconvs grouped k=3 conv
    t3_w_ref, t3_b_ref,          # (W, H), (1, H)
    s1_wg_ref, s1_wc_ref, s1_b_ref,   # sconvs[0] split: gathered / center halves
    s2_w_ref, s2_b_ref,
    s3_w_ref, s3_b_ref,
    fc_w_ref, fc_b_ref,
    o_ref,                       # (B, N_WAY)
    psel_ref,                    # VMEM scratch (k*BT, BT): stacked one-hot selections
    cent_ref,                    # VMEM scratch (k*BT, W):  replicated center features
    *, k,
):
    f32 = jnp.float32

    def mm(a, b):
        return jnp.dot(a, b, preferred_element_type=f32)

    def relu(v):
        return jnp.maximum(v, 0.0)

    x  = x_ref[...]
    sd = sd_ref[...]
    su = su_ref[...]
    bt = x.shape[0]

    # ---- backbone1: grouped Conv1d(k=3, pad=1) + ReLU as three per-tap matmuls.
    #      Project per-tap first (64 -> 32 channels), then shift the narrower result.
    h = relu(mm(sd, mm(x, bb_w_ref[0]))        # x[t-1] contribution (0 at t=0)
             + mm(x, bb_w_ref[1])              # x[t]
             + mm(su, mm(x, bb_w_ref[2]))      # x[t+1] contribution (0 at t=T-1)
             + bb_b_ref[...])                                            # (BT, H)

    # ---- GCNeXt temporal branch: 1x1 -> ReLU -> grouped k=3 -> ReLU -> 1x1 ----
    t1 = relu(mm(h, t1_w_ref[...]) + t1_b_ref[...])                      # (BT, W)
    t2 = relu(mm(sd, mm(t1, t2_w_ref[0]))
              + mm(t1, t2_w_ref[1])
              + mm(su, mm(t1, t2_w_ref[2]))
              + t2_b_ref[...])                                           # (BT, W)
    tout = mm(t2, t3_w_ref[...]) + t3_b_ref[...]                         # (BT, H)

    # ---- GCNeXt graph branch: knn + get_graph_feature(style=1) + sconvs + max_k ----
    gram = mm(h, h.T)                                                    # (BT, BT)
    row_id = lax.broadcasted_iota(jnp.int32, (bt, bt), 0)
    col_id = lax.broadcasted_iota(jnp.int32, (bt, bt), 1)
    eye = (row_id == col_id).astype(f32)
    sq_col = jnp.sum(gram * eye, axis=0, keepdims=True)                  # (1, BT): ||h_c||^2
    # per-row ranking score == -||h_r - h_c||^2 up to a row-constant (-||h_r||^2 dropped)
    score = 2.0 * gram - sq_col
    score = jnp.where(bmask_ref[...] > 0.5, score, -1e30)                # no cross-batch neighbors

    center = mm(h, s1_wc_ref[...]) + s1_b_ref[...]                       # shared "center" half + bias (BT, W)
    col_f = col_id.astype(f32)
    d = score
    for i in range(k):                 # iterative top-k (self is always selected first); VPU-only
        m = jnp.max(d, axis=1, keepdims=True)                            # (BT, 1) row max
        cand = jnp.where(d >= m, col_f, float(bt))
        sel = jnp.min(cand, axis=1, keepdims=True)                       # argmax, smallest-index tie-break
        p = (col_f == sel).astype(f32)                                   # one-hot selection (BT, BT)
        d = jnp.where(p > 0.5, -1e30, d)                                 # exclude for the next round
        psel_ref[pl.ds(i * bt, bt), :] = p                               # stack selection matrices
        cent_ref[pl.ds(i * bt, bt), :] = center                          # replicate center for this neighbor

    # Single batched sconv pass over all k neighbors (k*BT rows):
    gathered = mm(psel_ref[...], h)                                      # gather-as-matmul: h[idx]  (k*BT, H)
    s1 = relu(mm(gathered, s1_wg_ref[...]) + cent_ref[...])              # == cat([gathered, center]) @ W1 + b1
    s2 = relu(mm(s1, s2_w_ref[...]) + s2_b_ref[...])
    s3 = mm(s2, s3_w_ref[...]) + s3_b_ref[...]                           # (k*BT, H)
    sout = s3[:bt]
    for i in range(1, k):                                                # max over neighbors (static slices)
        sout = jnp.maximum(sout, s3[i * bt:(i + 1) * bt])

    # ---- residual fuse (enable_scale=False) + mean-over-time head + Linear ----
    gcn = relu(h + tout + sout)                                          # (BT, H)
    feat = mm(avg_ref[...], gcn)                                         # (B, H) = mean over T
    o_ref[...] = mm(feat, fc_w_ref[...]) + fc_b_ref[...]                 # (B, N_WAY)


# ------------------------------ parameter / constant setup -------------------
def conv_weight_to_dense_taps(w, groups):
    """torch (grouped) conv weight (C_out, C_in/groups, K_taps) -> K_taps dense
    (C_in, C_out) block-diagonal matmul matrices (one per temporal tap)."""
    C_out, Cg, K = w.shape
    C_in = Cg * groups
    out_g = C_out // groups
    taps = []
    for tap in range(K):
        dense = jnp.zeros((C_in, C_out), jnp.float32)
        for g in range(groups):
            blk = w[g * out_g:(g + 1) * out_g, :, tap].T                 # (Cg, out_g)
            dense = dense.at[g * Cg:(g + 1) * Cg,
                             g * out_g:(g + 1) * out_g].set(blk)
        taps.append(dense)
    return tuple(taps)


def build_constants(B, T):
    """Shift / same-batch-mask / time-averaging matrices over flattened rows r=b*T+t."""
    BT = B * T
    r = jnp.arange(BT)
    t = r % T
    sd = (jnp.equal(r[:, None] - 1, r[None, :]) & (t != 0)[:, None]).astype(jnp.float32)
    su = (jnp.equal(r[:, None] + 1, r[None, :]) & (t != T - 1)[:, None]).astype(jnp.float32)
    bmask = jnp.equal(r[:, None] // T, r[None, :] // T).astype(jnp.float32)
    avg = jnp.repeat(jnp.eye(B, dtype=jnp.float32), T, axis=1) / float(T)
    return sd, su, bmask, avg


def init_params(key):
    ks = jax.random.split(key, 16)

    def nrm(k, shape, scale=0.05):
        return scale * jax.random.normal(k, shape, jnp.float32)

    p = {}
    # backbone1: Conv1d(FEAT_DIM, H_DIM, 3, padding=1, groups=4) -> stacked per-tap dense
    p["bb_w"] = jnp.stack(conv_weight_to_dense_taps(
        nrm(ks[0], (H_DIM, FEAT_DIM // BB1_GROUPS, 3)), BB1_GROUPS))     # (3, FEAT, H)
    p["bb_b"] = nrm(ks[1], (1, H_DIM), 0.01)
    # GCNeXt.tconvs
    p["t1_w"] = conv_weight_to_dense_taps(nrm(ks[2], (WIDTH, H_DIM, 1)), 1)[0]
    p["t1_b"] = nrm(ks[3], (1, WIDTH), 0.01)
    p["t2_w"] = jnp.stack(conv_weight_to_dense_taps(
        nrm(ks[4], (WIDTH, WIDTH // GCN_GROUPS, 3)), GCN_GROUPS))        # (3, W, W)
    p["t2_b"] = nrm(ks[5], (1, WIDTH), 0.01)
    p["t3_w"] = conv_weight_to_dense_taps(nrm(ks[6], (H_DIM, WIDTH, 1)), 1)[0]
    p["t3_b"] = nrm(ks[7], (1, H_DIM), 0.01)
    # GCNeXt.sconvs (all 1x1 Conv2d); first one split into gathered/center halves
    s1_full = conv_weight_to_dense_taps(nrm(ks[8], (WIDTH, 2 * H_DIM, 1)), 1)[0]  # (2H, W)
    p["s1_wg"], p["s1_wc"] = s1_full[:H_DIM], s1_full[H_DIM:]
    p["s1_b"] = nrm(ks[9], (1, WIDTH), 0.01)
    p["s2_w"] = conv_weight_to_dense_taps(nrm(ks[10], (WIDTH, WIDTH // GCN_GROUPS, 1)), GCN_GROUPS)[0]
    p["s2_b"] = nrm(ks[11], (1, WIDTH), 0.01)
    p["s3_w"] = conv_weight_to_dense_taps(nrm(ks[12], (H_DIM, WIDTH, 1)), 1)[0]
    p["s3_b"] = nrm(ks[13], (1, H_DIM), 0.01)
    # last_layer: Linear(H_DIM, N_WAY)  (torch weight (N_WAY, H_DIM) -> transpose)
    p["fc_w"] = nrm(ks[14], (N_WAY, H_DIM)).T
    p["fc_b"] = nrm(ks[15], (1, N_WAY), 0.01)
    return p


# ------------------------------ forward wrappers ------------------------------
def stgcn_forward(params, snip_feature):
    """snip_feature: (B, FEAT_DIM, T), same NCW layout as the PyTorch module."""
    B, Cin, T = snip_feature.shape
    BT = B * T
    x = jnp.transpose(snip_feature, (0, 2, 1)).reshape(BT, Cin).astype(jnp.float32)
    sd, su, bmask, avg = build_constants(B, T)
    k = min(K_NEIGH, T)

    kernel = pl.pallas_call(
        functools.partial(_stgcn_kernel, k=k),
        out_shape=jax.ShapeDtypeStruct((B, N_WAY), jnp.float32),
        scratch_shapes=[
            pltpu.VMEM((k * BT, BT), jnp.float32),     # stacked one-hot neighbor selections
            pltpu.VMEM((k * BT, WIDTH), jnp.float32),  # replicated center features (+bias)
        ],
    )
    return kernel(
        x, sd, su, bmask, avg,
        params["bb_w"], params["bb_b"],
        params["t1_w"], params["t1_b"],
        params["t2_w"], params["t2_b"],
        params["t3_w"], params["t3_b"],
        params["s1_wg"], params["s1_wc"], params["s1_b"],
        params["s2_w"], params["s2_b"],
        params["s3_w"], params["s3_b"],
        params["fc_w"], params["fc_b"],
    )


def reference_forward(params, snip_feature):
    """Pure-JAX (XLA) reference with identical semantics, for cross-checking."""
    B, Cin, T = snip_feature.shape
    x = jnp.transpose(snip_feature, (0, 2, 1)).astype(jnp.float32)       # (B, T, Cin)
    relu = lambda v: jnp.maximum(v, 0.0)

    def conv3(z, w, b):
        zp = jnp.pad(z, ((0, 0), (1, 1), (0, 0)))
        return zp[:, :-2] @ w[0] + z @ w[1] + zp[:, 2:] @ w[2] + b

    h = relu(conv3(x, params["bb_w"], params["bb_b"]))
    t1 = relu(h @ params["t1_w"] + params["t1_b"])
    t2 = relu(conv3(t1, params["t2_w"], params["t2_b"]))
    tout = t2 @ params["t3_w"] + params["t3_b"]

    k = min(K_NEIGH, T)
    sq = jnp.sum(h * h, axis=-1)
    negd = 2.0 * jnp.einsum("btc,bsc->bts", h, h) - sq[:, :, None] - sq[:, None, :]
    _, idx = lax.top_k(negd, k)                                          # (B, T, k)
    gathered = jax.vmap(lambda hb, ib: hb[ib])(h, idx)                   # (B, T, k, H)
    s1 = relu(gathered @ params["s1_wg"]
              + (h @ params["s1_wc"])[:, :, None, :] + params["s1_b"])
    s2 = relu(s1 @ params["s2_w"] + params["s2_b"])
    s3 = s2 @ params["s3_w"] + params["s3_b"]
    sout = jnp.max(s3, axis=2)

    gcn = relu(h + tout + sout)
    feat = jnp.mean(gcn, axis=1)
    return feat @ params["fc_w"] + params["fc_b"]


if __name__ == "__main__":
    key = jax.random.PRNGKey(0)
    pkey, xkey = jax.random.split(key)
    params = init_params(pkey)
    snip_feature = jax.random.normal(xkey, (BATCH, FEAT_DIM, SEQ), jnp.float32)

    scores = jax.jit(stgcn_forward)(params, snip_feature)
    jax.block_until_ready(scores)

    assert scores.shape == (BATCH, N_WAY)
    assert bool(jnp.all(jnp.isfinite(scores)))

    # cross-check the fused kernel against the pure-JAX reference
    ref = reference_forward(params, snip_feature)
    assert bool(jnp.allclose(scores, ref, atol=1e-3, rtol=1e-2))

    print("KERNEL_OK")
</pallas_src>

<mosaic_0001>
module attributes {stable_mosaic.version = 11 : i64} {
  func.func @_stgcn_kernel(%arg0: memref<32x64xf32, #tpu.memory_space<vmem>>, %arg1: memref<32x32xf32, #tpu.memory_space<vmem>>, %arg2: memref<32x32xf32, #tpu.memory_space<vmem>>, %arg3: memref<32x32xf32, #tpu.memory_space<vmem>>, %arg4: memref<2x32xf32, #tpu.memory_space<vmem>>, %arg5: memref<3x64x32xf32, #tpu.memory_space<vmem>>, %arg6: memref<1x32xf32, #tpu.memory_space<vmem>>, %arg7: memref<32x32xf32, #tpu.memory_space<vmem>>, %arg8: memref<1x32xf32, #tpu.memory_space<vmem>>, %arg9: memref<3x32x32xf32, #tpu.memory_space<vmem>>, %arg10: memref<1x32xf32, #tpu.memory_space<vmem>>, %arg11: memref<32x32xf32, #tpu.memory_space<vmem>>, %arg12: memref<1x32xf32, #tpu.memory_space<vmem>>, %arg13: memref<32x32xf32, #tpu.memory_space<vmem>>, %arg14: memref<32x32xf32, #tpu.memory_space<vmem>>, %arg15: memref<1x32xf32, #tpu.memory_space<vmem>>, %arg16: memref<32x32xf32, #tpu.memory_space<vmem>>, %arg17: memref<1x32xf32, #tpu.memory_space<vmem>>, %arg18: memref<32x32xf32, #tpu.memory_space<vmem>>, %arg19: memref<1x32xf32, #tpu.memory_space<vmem>>, %arg20: memref<32x5xf32, #tpu.memory_space<vmem>>, %arg21: memref<1x5xf32, #tpu.memory_space<vmem>>, %arg22: memref<2x5xf32, #tpu.memory_space<vmem>>, %arg23: memref<96x32xf32, #tpu.memory_space<vmem>>, %arg24: memref<96x32xf32, #tpu.memory_space<vmem>>) attributes {dimension_semantics = [], scalar_prefetch = 0 : i64, scratch_operands = 2 : i64, tpu.core_type = #tpu.core_type<tc>} {
    %c0 = arith.constant 0 : index
    %c0_0 = arith.constant 0 : index
    %0 = vector.load %arg0[%c0, %c0_0] : memref<32x64xf32, #tpu.memory_space<vmem>>, vector<32x64xf32>
    %c0_1 = arith.constant 0 : index
    %c0_2 = arith.constant 0 : index
    %1 = vector.load %arg1[%c0_1, %c0_2] : memref<32x32xf32, #tpu.memory_space<vmem>>, vector<32x32xf32>
    %c0_3 = arith.constant 0 : index
    %c0_4 = arith.constant 0 : index
    %2 = vector.load %arg2[%c0_3, %c0_4] : memref<32x32xf32, #tpu.memory_space<vmem>>, vector<32x32xf32>
    %c0_5 = arith.constant 0 : index
    %c0_6 = arith.constant 0 : index
    %c0_7 = arith.constant 0 : index
    %3 = vector.load %arg5[%c0_5, %c0_6, %c0_7] : memref<3x64x32xf32, #tpu.memory_space<vmem>>, vector<1x64x32xf32>
    %4 = vector.shape_cast %3 : vector<1x64x32xf32> to vector<64x32xf32>
    %cst = arith.constant dense<0.000000e+00> : vector<32x32xf32>
    %5 = tpu.matmul %0, %4, %cst {dimension_numbers = #tpu.dot_dimension_numbers<[1], [0], [0], [1], [0, 0, 1, 1], [], []>} : vector<32x64xf32>, vector<64x32xf32>, vector<32x32xf32> -> vector<32x32xf32>
    %cst_8 = arith.constant dense<0.000000e+00> : vector<32x32xf32>
    %6 = tpu.matmul %1, %5, %cst_8 {dimension_numbers = #tpu.dot_dimension_numbers<[1], [0], [0], [1], [0, 0, 1, 1], [], []>} : vector<32x32xf32>, vector<32x32xf32>, vector<32x32xf32> -> vector<32x32xf32>
    %c1 = arith.constant 1 : index
    %c0_9 = arith.constant 0 : index
    %c0_10 = arith.constant 0 : index
    %7 = vector.load %arg5[%c1, %c0_9, %c0_10] : memref<3x64x32xf32, #tpu.memory_space<vmem>>, vector<1x64x32xf32>
    %8 = vector.shape_cast %7 : vector<1x64x32xf32> to vector<64x32xf32>
    %cst_11 = arith.constant dense<0.000000e+00> : vector<32x32xf32>
    %9 = tpu.matmul %0, %8, %cst_11 {dimension_numbers = #tpu.dot_dimension_numbers<[1], [0], [0], [1], [0, 0, 1, 1], [], []>} : vector<32x64xf32>, vector<64x32xf32>, vector<32x32xf32> -> vector<32x32xf32>
    %10 = arith.addf %6, %9 : vector<32x32xf32>
    %c2 = arith.constant 2 : index
    %c0_12 = arith.constant 0 : index
    %c0_13 = arith.constant 0 : index
    %11 = vector.load %arg5[%c2, %c0_12, %c0_13] : memref<3x64x32xf32, #tpu.memory_space<vmem>>, vector<1x64x32xf32>
    %12 = vector.shape_cast %11 : vector<1x64x32xf32> to vector<64x32xf32>
    %cst_14 = arith.constant dense<0.000000e+00> : vector<32x32xf32>
    %13 = tpu.matmul %0, %12, %cst_14 {dimension_numbers = #tpu.dot_dimension_numbers<[1], [0], [0], [1], [0, 0, 1, 1], [], []>} : vector<32x64xf32>, vector<64x32xf32>, vector<32x32xf32> -> vector<32x32xf32>
    %cst_15 = arith.constant dense<0.000000e+00> : vector<32x32xf32>
    %14 = tpu.matmul %2, %13, %cst_15 {dimension_numbers = #tpu.dot_dimension_numbers<[1], [0], [0], [1], [0, 0, 1, 1], [], []>} : vector<32x32xf32>, vector<32x32xf32>, vector<32x32xf32> -> vector<32x32xf32>
    %15 = arith.addf %10, %14 : vector<32x32xf32>
    %c0_16 = arith.constant 0 : index
    %c0_17 = arith.constant 0 : index
    %16 = vector.load %arg6[%c0_16, %c0_17] : memref<1x32xf32, #tpu.memory_space<vmem>>, vector<1x32xf32>
    %17 = vector.broadcast %16 : vector<1x32xf32> to vector<32x32xf32>
    %18 = arith.addf %15, %17 : vector<32x32xf32>
    %cst_18 = arith.constant 0.000000e+00 : f32
    %19 = vector.broadcast %cst_18 : f32 to vector<32x32xf32>
    %20 = arith.maximumf %18, %19 : vector<32x32xf32>
    %c0_19 = arith.constant 0 : index
    %c0_20 = arith.constant 0 : index
    %21 = vector.load %arg7[%c0_19, %c0_20] : memref<32x32xf32, #tpu.memory_space<vmem>>, vector<32x32xf32>
    %cst_21 = arith.constant dense<0.000000e+00> : vector<32x32xf32>
    %22 = tpu.matmul %20, %21, %cst_21 {dimension_numbers = #tpu.dot_dimension_numbers<[1], [0], [0], [1], [0, 0, 1, 1], [], []>} : vector<32x32xf32>, vector<32x32xf32>, vector<32x32xf32> -> vector<32x32xf32>
    %c0_22 = arith.constant 0 : index
    %c0_23 = arith.constant 0 : index
    %23 = vector.load %arg8[%c0_22, %c0_23] : memref<1x32xf32, #tpu.memory_space<vmem>>, vector<1x32xf32>
    %24 = vector.broadcast %23 : vector<1x32xf32> to vector<32x32xf32>
    %25 = arith.addf %22, %24 : vector<32x32xf32>
    %cst_24 = arith.constant 0.000000e+00 : f32
    %26 = vector.broadcast %cst_24 : f32 to vector<32x32xf32>
    %27 = arith.maximumf %25, %26 : vector<32x32xf32>
    %c0_25 = arith.constant 0 : index
    %c0_26 = arith.constant 0 : index
    %c0_27 = arith.constant 0 : index
    %28 = vector.load %arg9[%c0_25, %c0_26, %c0_27] : memref<3x32x32xf32, #tpu.memory_space<vmem>>, vector<1x32x32xf32>
    %29 = vector.shape_cast %28 : vector<1x32x32xf32> to vector<32x32xf32>
    %cst_28 = arith.constant dense<0.000000e+00> : vector<32x32xf32>
    %30 = tpu.matmul %27, %29, %cst_28 {dimension_numbers = #tpu.dot_dimension_numbers<[1], [0], [0], [1], [0, 0, 1, 1], [], []>} : vector<32x32xf32>, vector<32x32xf32>, vector<32x32xf32> -> vector<32x32xf32>
    %cst_29 = arith.constant dense<0.000000e+00> : vector<32x32xf32>
    %31 = tpu.matmul %1, %30, %cst_29 {dimension_numbers = #tpu.dot_dimension_numbers<[1], [0], [0], [1], [0, 0, 1, 1], [], []>} : vector<32x32xf32>, vector<32x32xf32>, vector<32x32xf32> -> vector<32x32xf32>
    %c1_30 = arith.constant 1 : index
    %c0_31 = arith.constant 0 : index
    %c0_32 = arith.constant 0 : index
    %32 = vector.load %arg9[%c1_30, %c0_31, %c0_32] : memref<3x32x32xf32, #tpu.memory_space<vmem>>, vector<1x32x32xf32>
    %33 = vector.shape_cast %32 : vector<1x32x32xf32> to vector<32x32xf32>
    %cst_33 = arith.constant dense<0.000000e+00> : vector<32x32xf32>
    %34 = tpu.matmul %27, %33, %cst_33 {dimension_numbers = #tpu.dot_dimension_numbers<[1], [0], [0], [1], [0, 0, 1, 1], [], []>} : vector<32x32xf32>, vector<32x32xf32>, vector<32x32xf32> -> vector<32x32xf32>
    %35 = arith.addf %31, %34 : vector<32x32xf32>
    %c2_34 = arith.constant 2 : index
    %c0_35 = arith.constant 0 : index
    %c0_36 = arith.constant 0 : index
    %36 = vector.load %arg9[%c2_34, %c0_35, %c0_36] : memref<3x32x32xf32, #tpu.memory_space<vmem>>, vector<1x32x32xf32>
    %37 = vector.shape_cast %36 : vector<1x32x32xf32> to vector<32x32xf32>
    %cst_37 = arith.constant dense<0.000000e+00> : vector<32x32xf32>
    %38 = tpu.matmul %27, %37, %cst_37 {dimension_numbers = #tpu.dot_dimension_numbers<[1], [0], [0], [1], [0, 0, 1, 1], [], []>} : vector<32x32xf32>, vector<32x32xf32>, vector<32x32xf32> -> vector<32x32xf32>
    %cst_38 = arith.constant dense<0.000000e+00> : vector<32x32xf32>
    %39 = tpu.matmul %2, %38, %cst_38 {dimension_numbers = #tpu.dot_dimension_numbers<[1], [0], [0], [1], [0, 0, 1, 1], [], []>} : vector<32x32xf32>, vector<32x32xf32>, vector<32x32xf32> -> vector<32x32xf32>
    %40 = arith.addf %35, %39 : vector<32x32xf32>
    %c0_39 = arith.constant 0 : index
    %c0_40 = arith.constant 0 : index
    %41 = vector.load %arg10[%c0_39, %c0_40] : memref<1x32xf32, #tpu.memory_space<vmem>>, vector<1x32xf32>
    %42 = vector.broadcast %41 : vector<1x32xf32> to vector<32x32xf32>
    %43 = arith.addf %40, %42 : vector<32x32xf32>
    %cst_41 = arith.constant 0.000000e+00 : f32
    %44 = vector.broadcast %cst_41 : f32 to vector<32x32xf32>
    %45 = arith.maximumf %43, %44 : vector<32x32xf32>
    %c0_42 = arith.constant 0 : index
    %c0_43 = arith.constant 0 : index
    %46 = vector.load %arg11[%c0_42, %c0_43] : memref<32x32xf32, #tpu.memory_space<vmem>>, vector<32x32xf32>
    %cst_44 = arith.constant dense<0.000000e+00> : vector<32x32xf32>
    %47 = tpu.matmul %45, %46, %cst_44 {dimension_numbers = #tpu.dot_dimension_numbers<[1], [0], [0], [1], [0, 0, 1, 1], [], []>} : vector<32x32xf32>, vector<32x32xf32>, vector<32x32xf32> -> vector<32x32xf32>
    %c0_45 = arith.constant 0 : index
    %c0_46 = arith.constant 0 : index
    %48 = vector.load %arg12[%c0_45, %c0_46] : memref<1x32xf32, #tpu.memory_space<vmem>>, vector<1x32xf32>
    %49 = vector.broadcast %48 : vector<1x32xf32> to vector<32x32xf32>
    %50 = arith.addf %47, %49 : vector<32x32xf32>
    %51 = tpu.transpose %20, [1, 0] : vector<32x32xf32> -> vector<32x32xf32>
    %cst_47 = arith.constant dense<0.000000e+00> : vector<32x32xf32>
    %52 = tpu.matmul %20, %51, %cst_47 {dimension_numbers = #tpu.dot_dimension_numbers<[1], [0], [0], [1], [0, 0, 1, 1], [], []>} : vector<32x32xf32>, vector<32x32xf32>, vector<32x32xf32> -> vector<32x32xf32>
    %53 = tpu.iota {dimensions = array<i32: 0>} : vector<32x32xi32>
    %54 = tpu.iota {dimensions = array<i32: 1>} : vector<32x32xi32>
    %55 = arith.cmpi eq, %53, %54 : vector<32x32xi32>
    %56 = arith.extui %55 : vector<32x32xi1> to vector<32x32xi32>
    %57 = arith.sitofp %56 : vector<32x32xi32> to vector<32x32xf32>
    %58 = arith.mulf %52, %57 : vector<32x32xf32>
    %cst_48 = arith.constant dense<0.000000e+00> : vector<32xf32>
    %59 = vector.multi_reduction <add>, %58, %cst_48 [0] : vector<32x32xf32> to vector<32xf32>
    %60 = vector.shape_cast %59 : vector<32xf32> to vector<1x32xf32>
    %cst_49 = arith.constant 2.000000e+00 : f32
    %61 = vector.broadcast %cst_49 : f32 to vector<32x32xf32>
    %62 = arith.mulf %61, %52 : vector<32x32xf32>
    %63 = vector.broadcast %60 : vector<1x32xf32> to vector<32x32xf32>
    %64 = arith.subf %62, %63 : vector<32x32xf32>
    %c0_50 = arith.constant 0 : index
    %c0_51 = arith.constant 0 : index
    %65 = vector.load %arg3[%c0_50, %c0_51] : memref<32x32xf32, #tpu.memory_space<vmem>>, vector<32x32xf32>
    %cst_52 = arith.constant 5.000000e-01 : f32
    %66 = vector.broadcast %cst_52 : f32 to vector<32x32xf32>
    %67 = arith.cmpf ogt, %65, %66 : vector<32x32xf32>
    %cst_53 = arith.constant -1.000000e+30 : f32
    %68 = vector.broadcast %cst_53 : f32 to vector<32x32xf32>
    %69 = arith.select %67, %64, %68 : vector<32x32xi1>, vector<32x32xf32>
    %c0_54 = arith.constant 0 : index
    %c0_55 = arith.constant 0 : index
    %70 = vector.load %arg14[%c0_54, %c0_55] : memref<32x32xf32, #tpu.memory_space<vmem>>, vector<32x32xf32>
    %cst_56 = arith.constant dense<0.000000e+00> : vector<32x32xf32>
    %71 = tpu.matmul %20, %70, %cst_56 {dimension_numbers = #tpu.dot_dimension_numbers<[1], [0], [0], [1], [0, 0, 1, 1], [], []>} : vector<32x32xf32>, vector<32x32xf32>, vector<32x32xf32> -> vector<32x32xf32>
    %c0_57 = arith.constant 0 : index
    %c0_58 = arith.constant 0 : index
    %72 = vector.load %arg15[%c0_57, %c0_58] : memref<1x32xf32, #tpu.memory_space<vmem>>, vector<1x32xf32>
    %73 = vector.broadcast %72 : vector<1x32xf32> to vector<32x32xf32>
    %74 = arith.addf %71, %73 : vector<32x32xf32>
    %75 = arith.sitofp %54 : vector<32x32xi32> to vector<32x32xf32>
    %cst_59 = arith.constant dense<0xFF800000> : vector<32xf32>
    %76 = vector.multi_reduction <maximumf>, %69, %cst_59 [1] : vector<32x32xf32> to vector<32xf32>
    %77 = vector.shape_cast %76 : vector<32xf32> to vector<32x1xf32>
    %78 = vector.broadcast %77 : vector<32x1xf32> to vector<32x32xf32>
    %79 = arith.cmpf oge, %69, %78 : vector<32x32xf32>
    %cst_60 = arith.constant 3.200000e+01 : f32
    %80 = vector.broadcast %cst_60 : f32 to vector<32x32xf32>
    %81 = arith.select %79, %75, %80 : vector<32x32xi1>, vector<32x32xf32>
    %cst_61 = arith.constant dense<0x7F800000> : vector<32xf32>
    %82 = vector.multi_reduction <minimumf>, %81, %cst_61 [1] : vector<32x32xf32> to vector<32xf32>
    %83 = vector.shape_cast %82 : vector<32xf32> to vector<32x1xf32>
    %84 = vector.broadcast %83 : vector<32x1xf32> to vector<32x32xf32>
    %85 = arith.cmpf oeq, %75, %84 : vector<32x32xf32>
    %86 = arith.extui %85 : vector<32x32xi1> to vector<32x32xi32>
    %87 = arith.sitofp %86 : vector<32x32xi32> to vector<32x32xf32>
    %cst_62 = arith.constant 5.000000e-01 : f32
    %88 = vector.broadcast %cst_62 : f32 to vector<32x32xf32>
    %89 = arith.cmpf ogt, %87, %88 : vector<32x32xf32>
    %cst_63 = arith.constant -1.000000e+30 : f32
    %90 = vector.broadcast %cst_63 : f32 to vector<32x32xf32>
    %91 = arith.select %89, %90, %69 : vector<32x32xi1>, vector<32x32xf32>
    %c0_64 = arith.constant 0 : index
    %c0_65 = arith.constant 0 : index
    %92 = vector.load %arg23[%c0_64, %c0_65] : memref<96x32xf32, #tpu.memory_space<vmem>>, vector<32x32xf32>
    tpu.vector_store %arg23[%c0_64, %c0_65], %87 {strides = array<i32>} : memref<96x32xf32, #tpu.memory_space<vmem>>, vector<32x32xf32>,
    %c0_66 = arith.constant 0 : index
    %c0_67 = arith.constant 0 : index
    %93 = vector.load %arg24[%c0_66, %c0_67] : memref<96x32xf32, #tpu.memory_space<vmem>>, vector<32x32xf32>
    tpu.vector_store %arg24[%c0_66, %c0_67], %74 {strides = array<i32>} : memref<96x32xf32, #tpu.memory_space<vmem>>, vector<32x32xf32>,
    %cst_68 = arith.constant dense<0xFF800000> : vector<32xf32>
    %94 = vector.multi_reduction <maximumf>, %91, %cst_68 [1] : vector<32x32xf32> to vector<32xf32>
    %95 = vector.shape_cast %94 : vector<32xf32> to vector<32x1xf32>
    %96 = vector.broadcast %95 : vector<32x1xf32> to vector<32x32xf32>
    %97 = arith.cmpf oge, %91, %96 : vector<32x32xf32>
    %cst_69 = arith.constant 3.200000e+01 : f32
    %98 = vector.broadcast %cst_69 : f32 to vector<32x32xf32>
    %99 = arith.select %97, %75, %98 : vector<32x32xi1>, vector<32x32xf32>
    %cst_70 = arith.constant dense<0x7F800000> : vector<32xf32>
    %100 = vector.multi_reduction <minimumf>, %99, %cst_70 [1] : vector<32x32xf32> to vector<32xf32>
    %101 = vector.shape_cast %100 : vector<32xf32> to vector<32x1xf32>
    %102 = vector.broadcast %101 : vector<32x1xf32> to vector<32x32xf32>
    %103 = arith.cmpf oeq, %75, %102 : vector<32x32xf32>
    %104 = arith.extui %103 : vector<32x32xi1> to vector<32x32xi32>
    %105 = arith.sitofp %104 : vector<32x32xi32> to vector<32x32xf32>
    %cst_71 = arith.constant 5.000000e-01 : f32
    %106 = vector.broadcast %cst_71 : f32 to vector<32x32xf32>
    %107 = arith.cmpf ogt, %105, %106 : vector<32x32xf32>
    %cst_72 = arith.constant -1.000000e+30 : f32
    %108 = vector.broadcast %cst_72 : f32 to vector<32x32xf32>
    %109 = arith.select %107, %108, %91 : vector<32x32xi1>, vector<32x32xf32>
    %c32 = arith.constant 32 : index
    %c0_73 = arith.constant 0 : index
    %110 = vector.load %arg23[%c32, %c0_73] : memref<96x32xf32, #tpu.memory_space<vmem>>, vector<32x32xf32>
    tpu.vector_store %arg23[%c32, %c0_73], %105 {strides = array<i32>} : memref<96x32xf32, #tpu.memory_space<vmem>>, vector<32x32xf32>,
    %c32_74 = arith.constant 32 : index
    %c0_75 = arith.constant 0 : index
    %111 = vector.load %arg24[%c32_74, %c0_75] : memref<96x32xf32, #tpu.memory_space<vmem>>, vector<32x32xf32>
    tpu.vector_store %arg24[%c32_74, %c0_75], %74 {strides = array<i32>} : memref<96x32xf32, #tpu.memory_space<vmem>>, vector<32x32xf32>,
    %cst_76 = arith.constant dense<0xFF800000> : vector<32xf32>
    %112 = vector.multi_reduction <maximumf>, %109, %cst_76 [1] : vector<32x32xf32> to vector<32xf32>
    %113 = vector.shape_cast %112 : vector<32xf32> to vector<32x1xf32>
    %114 = vector.broadcast %113 : vector<32x1xf32> to vector<32x32xf32>
    %115 = arith.cmpf oge, %109, %114 : vector<32x32xf32>
    %cst_77 = arith.constant 3.200000e+01 : f32
    %116 = vector.broadcast %cst_77 : f32 to vector<32x32xf32>
    %117 = arith.select %115, %75, %116 : vector<32x32xi1>, vector<32x32xf32>
    %cst_78 = arith.constant dense<0x7F800000> : vector<32xf32>
    %118 = vector.multi_reduction <minimumf>, %117, %cst_78 [1] : vector<32x32xf32> to vector<32xf32>
    %119 = vector.shape_cast %118 : vector<32xf32> to vector<32x1xf32>
    %120 = vector.broadcast %119 : vector<32x1xf32> to vector<32x32xf32>
    %121 = arith.cmpf oeq, %75, %120 : vector<32x32xf32>
    %122 = arith.extui %121 : vector<32x32xi1> to vector<32x32xi32>
    %123 = arith.sitofp %122 : vector<32x32xi32> to vector<32x32xf32>
    %c64 = arith.constant 64 : index
    %c0_79 = arith.constant 0 : index
    %124 = vector.load %arg23[%c64, %c0_79] : memref<96x32xf32, #tpu.memory_space<vmem>>, vector<32x32xf32>
    tpu.vector_store %arg23[%c64, %c0_79], %123 {strides = array<i32>} : memref<96x32xf32, #tpu.memory_space<vmem>>, vector<32x32xf32>,
    %c64_80 = arith.constant 64 : index
    %c0_81 = arith.constant 0 : index
    %125 = vector.load %arg24[%c64_80, %c0_81] : memref<96x32xf32, #tpu.memory_space<vmem>>, vector<32x32xf32>
    tpu.vector_store %arg24[%c64_80, %c0_81], %74 {strides = array<i32>} : memref<96x32xf32, #tpu.memory_space<vmem>>, vector<32x32xf32>,
    %c0_82 = arith.constant 0 : index
    %c0_83 = arith.constant 0 : index
    %126 = vector.load %arg23[%c0_82, %c0_83] : memref<96x32xf32, #tpu.memory_space<vmem>>, vector<96x32xf32>
    %cst_84 = arith.constant dense<0.000000e+00> : vector<96x32xf32>
    %127 = tpu.matmul %126, %20, %cst_84 {dimension_numbers = #tpu.dot_dimension_numbers<[1], [0], [0], [1], [0, 0, 1, 1], [], []>} : vector<96x32xf32>, vector<32x32xf32>, vector<96x32xf32> -> vector<96x32xf32>
    %c0_85 = arith.constant 0 : index
    %c0_86 = arith.constant 0 : index
    %128 = vector.load %arg13[%c0_85, %c0_86] : memref<32x32xf32, #tpu.memory_space<vmem>>, vector<32x32xf32>
    %cst_87 = arith.constant dense<0.000000e+00> : vector<96x32xf32>
    %129 = tpu.matmul %127, %128, %cst_87 {dimension_numbers = #tpu.dot_dimension_numbers<[1], [0], [0], [1], [0, 0, 1, 1], [], []>} : vector<96x32xf32>, vector<32x32xf32>, vector<96x32xf32> -> vector<96x32xf32>
    %c0_88 = arith.constant 0 : index
    %c0_89 = arith.constant 0 : index
    %130 = vector.load %arg24[%c0_88, %c0_89] : memref<96x32xf32, #tpu.memory_space<vmem>>, vector<96x32xf32>
    %131 = arith.addf %129, %130 : vector<96x32xf32>
    %cst_90 = arith.constant 0.000000e+00 : f32
    %132 = vector.broadcast %cst_90 : f32 to vector<96x32xf32>
    %133 = arith.maximumf %131, %132 : vector<96x32xf32>
    %c0_91 = arith.constant 0 : index
    %c0_92 = arith.constant 0 : index
    %134 = vector.load %arg16[%c0_91, %c0_92] : memref<32x32xf32, #tpu.memory_space<vmem>>, vector<32x32xf32>
    %cst_93 = arith.constant dense<0.000000e+00> : vector<96x32xf32>
    %135 = tpu.matmul %133, %134, %cst_93 {dimension_numbers = #tpu.dot_dimension_numbers<[1], [0], [0], [1], [0, 0, 1, 1], [], []>} : vector<96x32xf32>, vector<32x32xf32>, vector<96x32xf32> -> vector<96x32xf32>
    %c0_94 = arith.constant 0 : index
    %c0_95 = arith.constant 0 : index
    %136 = vector.load %arg17[%c0_94, %c0_95] : memref<1x32xf32, #tpu.memory_space<vmem>>, vector<1x32xf32>
    %137 = vector.broadcast %136 : vector<1x32xf32> to vector<96x32xf32>
    %138 = arith.addf %135, %137 : vector<96x32xf32>
    %cst_96 = arith.constant 0.000000e+00 : f32
    %139 = vector.broadcast %cst_96 : f32 to vector<96x32xf32>
    %140 = arith.maximumf %138, %139 : vector<96x32xf32>
    %c0_97 = arith.constant 0 : index
    %c0_98 = arith.constant 0 : index
    %141 = vector.load %arg18[%c0_97, %c0_98] : memref<32x32xf32, #tpu.memory_space<vmem>>, vector<32x32xf32>
    %cst_99 = arith.constant dense<0.000000e+00> : vector<96x32xf32>
    %142 = tpu.matmul %140, %141, %cst_99 {dimension_numbers = #tpu.dot_dimension_numbers<[1], [0], [0], [1], [0, 0, 1, 1], [], []>} : vector<96x32xf32>, vector<32x32xf32>, vector<96x32xf32> -> vector<96x32xf32>
    %c0_100 = arith.constant 0 : index
    %c0_101 = arith.constant 0 : index
    %143 = vector.load %arg19[%c0_100, %c0_101] : memref<1x32xf32, #tpu.memory_space<vmem>>, vector<1x32xf32>
    %144 = vector.broadcast %143 : vector<1x32xf32> to vector<96x32xf32>
    %145 = arith.addf %142, %144 : vector<96x32xf32>
    %146 = vector.extract_strided_slice %145 {offsets = [0, 0], sizes = [32, 32], strides = [1, 1]} : vector<96x32xf32> to vector<32x32xf32>
    %147 = vector.extract_strided_slice %145 {offsets = [32, 0], sizes = [32, 32], strides = [1, 1]} : vector<96x32xf32> to vector<32x32xf32>
    %148 = arith.maximumf %146, %147 : vector<32x32xf32>
    %149 = vector.extract_strided_slice %145 {offsets = [64, 0], sizes = [32, 32], strides = [1, 1]} : vector<96x32xf32> to vector<32x32xf32>
    %150 = arith.maximumf %148, %149 : vector<32x32xf32>
    %151 = arith.addf %20, %50 : vector<32x32xf32>
    %152 = arith.addf %151, %150 : vector<32x32xf32>
    %cst_102 = arith.constant 0.000000e+00 : f32
    %153 = vector.broadcast %cst_102 : f32 to vector<32x32xf32>
    %154 = arith.maximumf %152, %153 : vector<32x32xf32>
    %c0_103 = arith.constant 0 : index
    %c0_104 = arith.constant 0 : index
    %155 = vector.load %arg4[%c0_103, %c0_104] : memref<2x32xf32, #tpu.memory_space<vmem>>, vector<2x32xf32>
    %cst_105 = arith.constant dense<0.000000e+00> : vector<2x32xf32>
    %156 = tpu.matmul %155, %154, %cst_105 {dimension_numbers = #tpu.dot_dimension_numbers<[1], [0], [0], [1], [0, 0, 1, 1], [], []>} : vector<2x32xf32>, vector<32x32xf32>, vector<2x32xf32> -> vector<2x32xf32>
    %c0_106 = arith.constant 0 : index
    %c0_107 = arith.constant 0 : index
    %157 = vector.load %arg20[%c0_106, %c0_107] : memref<32x5xf32, #tpu.memory_space<vmem>>, vector<32x5xf32>
    %cst_108 = arith.constant dense<0.000000e+00> : vector<2x5xf32>
    %158 = tpu.matmul %156, %157, %cst_108 {dimension_numbers = #tpu.dot_dimension_numbers<[1], [0], [0], [1], [0, 0, 1, 1], [], []>} : vector<2x32xf32>, vector<32x5xf32>, vector<2x5xf32> -> vector<2x5xf32>
    %c0_109 = arith.constant 0 : index
    %c0_110 = arith.constant 0 : index
    %159 = vector.load %arg21[%c0_109, %c0_110] : memref<1x5xf32, #tpu.memory_space<vmem>>, vector<1x5xf32>
    %160 = vector.broadcast %159 : vector<1x5xf32> to vector<2x5xf32>
    %161 = arith.addf %158, %160 : vector<2x5xf32>
    %c0_111 = arith.constant 0 : index
    %c0_112 = arith.constant 0 : index
    %162 = vector.load %arg22[%c0_111, %c0_112] : memref<2x5xf32, #tpu.memory_space<vmem>>, vector<2x5xf32>
    tpu.vector_store %arg22[%c0_111, %c0_112], %161 {strides = array<i32>} : memref<2x5xf32, #tpu.memory_space<vmem>>, vector<2x5xf32>,
    return
  }
}

</mosaic_0001>

<llo_original>
// kernel: stgcn_forward.1
$region0: #{stgcn_forward.1}
  #allocation0 [shape = 'u32[]', space=smem, size = 0x4, offset = 0x4, fixed_abs, tag = 'smem constant byte address 0x4 - core index']
  #allocation1 [shape = 'u32[144,128]{1,0:T(1,128)}', space=vmem, size = 0x12000, scoped, tag = 'internal scratch']
  #allocation2 [shape = 'f32[96,32]{1,0:T(8,128)}', space=vmem, size = 0xc000, scoped, tag = 'scratch operand']
  #allocation3 [shape = 'f32[96,32]{1,0:T(8,128)}', space=vmem, size = 0xc000, scoped, tag = 'scratch operand']
  %s0 = inlined_call_operand.vmem [shape: f32[32,64], index: 0, kind: input, shape index: {}]
  %s1 = inlined_call_operand.vmem [shape: f32[32,32], index: 1, kind: input, shape index: {}]
  %s2 = inlined_call_operand.vmem [shape: f32[32,32], index: 2, kind: input, shape index: {}]
  %s3 = inlined_call_operand.vmem [shape: f32[32,32], index: 3, kind: input, shape index: {}]
  %s4 = inlined_call_operand.vmem [shape: f32[2,32], index: 4, kind: input, shape index: {}]
  %s5 = inlined_call_operand.vmem [shape: f32[3,64,32], index: 5, kind: input, shape index: {}]
  %s6 = inlined_call_operand.vmem [shape: f32[1,32], index: 6, kind: input, shape index: {}]
  %s7 = inlined_call_operand.vmem [shape: f32[32,32], index: 7, kind: input, shape index: {}]
  %s8 = inlined_call_operand.vmem [shape: f32[1,32], index: 8, kind: input, shape index: {}]
  %s9 = inlined_call_operand.vmem [shape: f32[3,32,32], index: 9, kind: input, shape index: {}]
  %s10 = inlined_call_operand.vmem [shape: f32[1,32], index: 10, kind: input, shape index: {}]
  %s11 = inlined_call_operand.vmem [shape: f32[32,32], index: 11, kind: input, shape index: {}]
  %s12 = inlined_call_operand.vmem [shape: f32[1,32], index: 12, kind: input, shape index: {}]
  %s13 = inlined_call_operand.vmem [shape: f32[32,32], index: 13, kind: input, shape index: {}]
  %s14 = inlined_call_operand.vmem [shape: f32[32,32], index: 14, kind: input, shape index: {}]
  %s15 = inlined_call_operand.vmem [shape: f32[1,32], index: 15, kind: input, shape index: {}]
  %s16 = inlined_call_operand.vmem [shape: f32[32,32], index: 16, kind: input, shape index: {}]
  %s17 = inlined_call_operand.vmem [shape: f32[1,32], index: 17, kind: input, shape index: {}]
  %s18 = inlined_call_operand.vmem [shape: f32[32,32], index: 18, kind: input, shape index: {}]
  %s19 = inlined_call_operand.vmem [shape: f32[1,32], index: 19, kind: input, shape index: {}]
  %s20 = inlined_call_operand.vmem [shape: f32[32,5], index: 20, kind: input, shape index: {}]
  %s21 = inlined_call_operand.vmem [shape: f32[1,5], index: 21, kind: input, shape index: {}]
  %s22 = inlined_call_operand.hbm [shape: f32[2,5], index: 22, kind: output, shape index: {}]
  %s23 = sld [smem:[#allocation0]]
  $region98: #{stgcn_forward.1} parent=0
    _
  %s25 = ssub.s32 1, %s23
  %s26 = scalar_select 0, %s25, %s23
  $region1: #{stgcn_forward.1} parent=0
    #allocation4 [shape = 'u8[1024]{0}', space=vmem, size = 0x400, scoped, tag = 'output window, operand 0, single buffered']
    #allocation5 [shape = 's32[1]{0}', space=sflag, size = 0x4, scoped, tag = 'scoped memory for stgcn_forward.1']
    %27 = vsyncpa [#allocation5], 0
    // Predicated region
    $region2: #{stgcn_forward.1} parent=1 // pred_check
      _
    $region3: #{stgcn_forward.1} parent=1 // pred_check_branch
      %29 = sbr.rel (0) target = $region5
    $region4: #{stgcn_forward.1} parent=1 // pred_region
      _
    $region5: #{stgcn_forward.1} parent=1 // pred_fallthru
      _
    // Predicated region
    $region6: #{stgcn_forward.1} parent=1 // pred_check
      _
    $region7: #{stgcn_forward.1} parent=1 // pred_check_branch
      %31 = sbr.rel (0) target = $region9
    $region8: #{stgcn_forward.1} parent=1 // pred_region
      _
    $region9: #{stgcn_forward.1} parent=1 // pred_fallthru
      _
    // Predicated region
    $region10: #{stgcn_forward.1} parent=1 // pred_check
      _
    $region11: #{stgcn_forward.1} parent=1 // pred_check_branch
      %33 = sbr.rel (0) target = $region13
    $region12: #{stgcn_forward.1} parent=1 // pred_region
      _
    $region13: #{stgcn_forward.1} parent=1 // pred_fallthru
      _
    // Predicated region
    $region14: #{stgcn_forward.1} parent=1 // pred_check
      _
    $region15: #{stgcn_forward.1} parent=1 // pred_check_branch
      %35 = sbr.rel (0) target = $region17
    $region16: #{stgcn_forward.1} parent=1 // pred_region
      _
    $region17: #{stgcn_forward.1} parent=1 // pred_fallthru
      _
    // Predicated region
    $region18: #{stgcn_forward.1} parent=1 // pred_check
      _
    $region19: #{stgcn_forward.1} parent=1 // pred_check_branch
      %37 = sbr.rel (0) target = $region21
    $region20: #{stgcn_forward.1} parent=1 // pred_region
      _
    $region21: #{stgcn_forward.1} parent=1 // pred_fallthru
      _
    // Predicated region
    $region22: #{stgcn_forward.1} parent=1 // pred_check
      _
    $region23: #{stgcn_forward.1} parent=1 // pred_check_branch
      %39 = sbr.rel (0) target = $region25
    $region24: #{stgcn_forward.1} parent=1 // pred_region
      _
    $region25: #{stgcn_forward.1} parent=1 // pred_fallthru
      _
    // Predicated region
    $region26: #{stgcn_forward.1} parent=1 // pred_check
      _
    $region27: #{stgcn_forward.1} parent=1 // pred_check_branch
      %41 = sbr.rel (0) target = $region29
    $region28: #{stgcn_forward.1} parent=1 // pred_region
      _
    $region29: #{stgcn_forward.1} parent=1 // pred_fallthru
      _
    // Predicated region
    $region30: #{stgcn_forward.1} parent=1 // pred_check
      _
    $region31: #{stgcn_forward.1} parent=1 // pred_check_branch
      %43 = sbr.rel (0) target = $region33
    $region32: #{stgcn_forward.1} parent=1 // pred_region
      _
    $region33: #{stgcn_forward.1} parent=1 // pred_fallthru
      _
    // Predicated region
    $region34: #{stgcn_forward.1} parent=1 // pred_check
      _
    $region35: #{stgcn_forward.1} parent=1 // pred_check_branch
      %45 = sbr.rel (0) target = $region37
    $region36: #{stgcn_forward.1} parent=1 // pred_region
      _
    $region37: #{stgcn_forward.1} parent=1 // pred_fallthru
      _
    // Predicated region
    $region38: #{stgcn_forward.1} parent=1 // pred_check
      _
    $region39: #{stgcn_forward.1} parent=1 // pred_check_branch
      %47 = sbr.rel (0) target = $region41
    $region40: #{stgcn_forward.1} parent=1 // pred_region
      _
    $region41: #{stgcn_forward.1} parent=1 // pred_fallthru
      _
    // Predicated region
    $region42: #{stgcn_forward.1} parent=1 // pred_check
      _
    $region43: #{stgcn_forward.1} parent=1 // pred_check_branch
      %49 = sbr.rel (0) target = $region45
    $region44: #{stgcn_forward.1} parent=1 // pred_region
      _
    $region45: #{stgcn_forward.1} parent=1 // pred_fallthru
      _
    // Predicated region
    $region46: #{stgcn_forward.1} parent=1 // pred_check
      _
    $region47: #{stgcn_forward.1} parent=1 // pred_check_branch
      %51 = sbr.rel (0) target = $region49
    $region48: #{stgcn_forward.1} parent=1 // pred_region
      _
    $region49: #{stgcn_forward.1} parent=1 // pred_fallthru
      _
    // Predicated region
    $region50: #{stgcn_forward.1} parent=1 // pred_check
      _
    $region51: #{stgcn_forward.1} parent=1 // pred_check_branch
      %53 = sbr.rel (0) target = $region53
    $region52: #{stgcn_forward.1} parent=1 // pred_region
      _
    $region53: #{stgcn_forward.1} parent=1 // pred_fallthru
      _
    // Predicated region
    $region54: #{stgcn_forward.1} parent=1 // pred_check
      _
    $region55: #{stgcn_forward.1} parent=1 // pred_check_branch
      %55 = sbr.rel (0) target = $region57
    $region56: #{stgcn_forward.1} parent=1 // pred_region
      _
    $region57: #{stgcn_forward.1} parent=1 // pred_fallthru
      _
    // Predicated region
    $region58: #{stgcn_forward.1} parent=1 // pred_check
      _
    $region59: #{stgcn_forward.1} parent=1 // pred_check_branch
      %57 = sbr.rel (0) target = $region61
    $region60: #{stgcn_forward.1} parent=1 // pred_region
      _
    $region61: #{stgcn_forward.1} parent=1 // pred_fallthru
      _
    // Predicated region
    $region62: #{stgcn_forward.1} parent=1 // pred_check
      _
    $region63: #{stgcn_forward.1} parent=1 // pred_check_branch
      %59 = sbr.rel (0) target = $region65
    $region64: #{stgcn_forward.1} parent=1 // pred_region
      _
    $region65: #{stgcn_forward.1} parent=1 // pred_fallthru
      _
    // Predicated region
    $region66: #{stgcn_forward.1} parent=1 // pred_check
      _
    $region67: #{stgcn_forward.1} parent=1 // pred_check_branch
      %61 = sbr.rel (0) target = $region69
    $region68: #{stgcn_forward.1} parent=1 // pred_region
      _
    $region69: #{stgcn_forward.1} parent=1 // pred_fallthru
      _
    // Predicated region
    $region70: #{stgcn_forward.1} parent=1 // pred_check
      _
    $region71: #{stgcn_forward.1} parent=1 // pred_check_branch
      %63 = sbr.rel (0) target = $region73
    $region72: #{stgcn_forward.1} parent=1 // pred_region
      _
    $region73: #{stgcn_forward.1} parent=1 // pred_fallthru
      _
    // Predicated region
    $region74: #{stgcn_forward.1} parent=1 // pred_check
      _
    $region75: #{stgcn_forward.1} parent=1 // pred_check_branch
      %65 = sbr.rel (0) target = $region77
    $region76: #{stgcn_forward.1} parent=1 // pred_region
      _
    $region77: #{stgcn_forward.1} parent=1 // pred_fallthru
      _
    // Predicated region
    $region78: #{stgcn_forward.1} parent=1 // pred_check
      _
    $region79: #{stgcn_forward.1} parent=1 // pred_check_branch
      %67 = sbr.rel (0) target = $region81
    $region80: #{stgcn_forward.1} parent=1 // pred_region
      _
    $region81: #{stgcn_forward.1} parent=1 // pred_fallthru
      _
    // Predicated region
    $region82: #{stgcn_forward.1} parent=1 // pred_check
      _
    $region83: #{stgcn_forward.1} parent=1 // pred_check_branch
      %69 = sbr.rel (0) target = $region85
    $region84: #{stgcn_forward.1} parent=1 // pred_region
      _
    $region85: #{stgcn_forward.1} parent=1 // pred_fallthru
      _
    // Predicated region
    $region86: #{stgcn_forward.1} parent=1 // pred_check
      _
    $region87: #{stgcn_forward.1} parent=1 // pred_check_branch
      %71 = sbr.rel (0) target = $region89
    $region88: #{stgcn_forward.1} parent=1 // pred_region
      _
    $region89: #{stgcn_forward.1} parent=1 // pred_fallthru
      _
    %v72 = vld [vmem:[%s0] sm:$0xff]
    %v73 = vld [vmem:[%s0 + $0x8] sm:$0xff]
    %v74 = vld [vmem:[%s0 + $0x10] sm:$0xff]
    %v75 = vld [vmem:[%s0 + $0x18] sm:$0xff]
    %v76 = vld [vmem:[%s1] sm:$0xff]
    %v77 = vld [vmem:[%s1 + $0x8] sm:$0xff]
    %v78 = vld [vmem:[%s1 + $0x10] sm:$0xff]
    %v79 = vld [vmem:[%s1 + $0x18] sm:$0xff]
    %v80 = vld [vmem:[%s2] sm:$0xff]
    %v81 = vld [vmem:[%s2 + $0x8] sm:$0xff]
    %v82 = vld [vmem:[%s2 + $0x10] sm:$0xff]
    %v83 = vld [vmem:[%s2 + $0x18] sm:$0xff]
    %v84 = vld [vmem:[%s5] sm:$0xff]
    %v85 = vld [vmem:[%s5 + $0x8] sm:$0xff]
    %v86 = vld [vmem:[%s5 + $0x10] sm:$0xff]
    %v87 = vld [vmem:[%s5 + $0x18] sm:$0xff]
    %v88 = vld [vmem:[%s5 + $0x20] sm:$0xff]
    %v89 = vld [vmem:[%s5 + $0x28] sm:$0xff]
    %v90 = vld [vmem:[%s5 + $0x30] sm:$0xff]
    %v91 = vld [vmem:[%s5 + $0x38] sm:$0xff]
    %vm92 = vcmask 523264
    %v94 = vsel %vm92, %v72, 0
    %v97 = vsel %vm92, %v73, 0
    %v100 = vsel %vm92, %v74, 0
    %v103 = vsel %vm92, %v75, 0
    %105 = vmatprep.subr.mxu0 0.0
    %106 = vmatpush1.msra.mxu0 %v84
    %107 = vmatprep.subr.mxu0 0.0
    %108 = vmatpush1.msra.mxu0 %v85
    %109 = vmatprep.subr.mxu0 0.0
    %110 = vmatpush1.msra.mxu0 %v86
    %111 = vmatprep.subr.mxu0 0.0
    %112 = vmatpush1.msra.mxu0 %v87
    %113 = vmatprep.subr.mxu0 0.0
    %114 = vmatpush1.msra.mxu0 %v88
    %115 = vmatprep.subr.mxu0 0.0
    %116 = vmatpush1.msra.mxu0 %v89
    %117 = vmatprep.subr.mxu0 0.0
    %118 = vmatpush1.msra.mxu0 %v90
    %119 = vmatprep.subr.mxu0 0.0
    %120 = vmatpush1.msra.mxu0 %v91
    %121 = vmatprep.subr.mxu0 0.0
    %122 = vmatpush1.msra.mxu0 0.0
    %123 = vmatprep.subr.mxu0 0.0
    %124 = vmatpush1.msra.mxu0 0.0
    %125 = vmatprep.subr.mxu0 0.0
    %126 = vmatpush1.msra.mxu0 0.0
    %127 = vmatprep.subr.mxu0 0.0
    %128 = vmatpush1.msra.mxu0 0.0
    %129 = vmatprep.subr.mxu0 0.0
    %130 = vmatpush1.msra.mxu0 0.0
    %131 = vmatprep.subr.mxu0 0.0
    %132 = vmatpush1.msra.mxu0 0.0
    %133 = vmatprep.subr.mxu0 0.0
    %134 = vmatpush1.msra.mxu0 0.0
    %135 = vmatprep.subr.mxu0 0.0
    %136 = vmatpush1.msra.mxu0 0.0
    %137 = vmatprep.subr.mxu0 0.0
    %138 = vmatpush1.msra.mxu0 0.0
    %139 = vmatprep.subr.mxu0 0.0
    %140 = vmatpush1.msra.mxu0 0.0
    %141 = vmatprep.subr.mxu0 0.0
    %142 = vmatpush1.msra.mxu0 0.0
    %143 = vmatprep.subr.mxu0 0.0
    %144 = vmatpush1.msra.mxu0 0.0
    %145 = vmatprep.subr.mxu0 0.0
    %146 = vmatpush1.msra.mxu0 0.0
    %147 = vmatprep.subr.mxu0 0.0
    %148 = vmatpush1.msra.mxu0 0.0
    %149 = vmatprep.subr.mxu0 0.0
    %150 = vmatpush1.msra.mxu0 0.0
    %151 = vmatprep.subr.mxu0 0.0
    %152 = vmatpush1.msra.mxu0 0.0
    %153 = vmatprep.subr.mxu0 0.0
    %154 = vmatpush1.msra.mxu0 0.0
    %155 = vmatprep.subr.mxu0 0.0
    %156 = vmatpush1.msra.mxu0 0.0
    %157 = vmatprep.subr.mxu0 0.0
    %158 = vmatpush1.msra.mxu0 0.0
    %159 = vmatprep.subr.mxu0 0.0
    %160 = vmatpush1.msra.mxu0 0.0
    %161 = vmatprep.subr.mxu0 0.0
    %162 = vmatpush1.msra.mxu0 0.0
    %163 = vmatprep.subr.mxu0 0.0
    %164 = vmatpush1.msra.mxu0 0.0
    %165 = vmatprep.subr.mxu0 0.0
    %166 = vmatpush1.msra.mxu0 0.0
    %167 = vmatprep.subr.mxu0 0.0
    %168 = vmatpush1.msra.mxu0 0.0
    %169 = vmatprep.mubr.f32.mxu0 0.0
    %170 = vmatmul.mubr.f32.gmra.mrb[0].mxu0 %v94
    %v171 = vpop.f32.mrb[0].mxu0
    %v172 = vadd.f32 0.0, %v171
    %v173 = vpop.f32.mrb[0].mxu0
    %174 = vmatprep.mubr.f32.mxu0 0.0
    %175 = vmatmul.mubr.f32.gmra.mrb[0].mxu0 %v97
    %v176 = vpop.f32.mrb[0].mxu0
    %v177 = vadd.f32 0.0, %v176
    %v178 = vpop.f32.mrb[0].mxu0
    %179 = vmatprep.mubr.f32.mxu0 0.0
    %180 = vmatmul.mubr.f32.gmra.mrb[0].mxu0 %v100
    %v181 = vpop.f32.mrb[0].mxu0
    %v182 = vadd.f32 0.0, %v181
    %v183 = vpop.f32.mrb[0].mxu0
    %184 = vmatprep.mubr.f32.mxu0 0.0
    %185 = vmatmul.mubr.f32.gmra.mrb[0].mxu0 %v103
    %v186 = vpop.f32.mrb[0].mxu0
    %v187 = vadd.f32 0.0, %v186
    %v188 = vpop.f32.mrb[0].mxu0
    %189 = vdwg.mxu0
    %s190 = scalar_lea.vmem %s5, 64
    %v191 = vld [vmem:[%s190] sm:$0xff]
    %v192 = vld [vmem:[%s190 + $0x8] sm:$0xff]
    %v193 = vld [vmem:[%s190 + $0x10] sm:$0xff]
    %v194 = vld [vmem:[%s190 + $0x18] sm:$0xff]
    %v195 = vld [vmem:[%s190 + $0x20] sm:$0xff]
    %v196 = vld [vmem:[%s190 + $0x28] sm:$0xff]
    %v197 = vld [vmem:[%s190 + $0x30] sm:$0xff]
    %v198 = vld [vmem:[%s190 + $0x38] sm:$0xff]
    %199 = vmatprep.subr.mxu0 0.0
    %200 = vmatpush1.msra.mxu0 %v191
    %201 = vmatprep.subr.mxu0 0.0
    %202 = vmatpush1.msra.mxu0 %v192
    %203 = vmatprep.subr.mxu0 0.0
    %204 = vmatpush1.msra.mxu0 %v193
    %205 = vmatprep.subr.mxu0 0.0
    %206 = vmatpush1.msra.mxu0 %v194
    %207 = vmatprep.subr.mxu0 0.0
    %208 = vmatpush1.msra.mxu0 %v195
    %209 = vmatprep.subr.mxu0 0.0
    %210 = vmatpush1.msra.mxu0 %v196
    %211 = vmatprep.subr.mxu0 0.0
    %212 = vmatpush1.msra.mxu0 %v197
    %213 = vmatprep.subr.mxu0 0.0
    %214 = vmatpush1.msra.mxu0 %v198
    %215 = vmatprep.subr.mxu0 0.0
    %216 = vmatpush1.msra.mxu0 0.0
    %217 = vmatprep.subr.mxu0 0.0
    %218 = vmatpush1.msra.mxu0 0.0
    %219 = vmatprep.subr.mxu0 0.0
    %220 = vmatpush1.msra.mxu0 0.0
    %221 = vmatprep.subr.mxu0 0.0
    %222 = vmatpush1.msra.mxu0 0.0
    %223 = vmatprep.subr.mxu0 0.0
    %224 = vmatpush1.msra.mxu0 0.0
    %225 = vmatprep.subr.mxu0 0.0
    %226 = vmatpush1.msra.mxu0 0.0
    %227 = vmatprep.subr.mxu0 0.0
    %228 = vmatpush1.msra.mxu0 0.0
    %229 = vmatprep.subr.mxu0 0.0
    %230 = vmatpush1.msra.mxu0 0.0
    %231 = vmatprep.subr.mxu0 0.0
    %232 = vmatpush1.msra.mxu0 0.0
    %233 = vmatprep.subr.mxu0 0.0
    %234 = vmatpush1.msra.mxu0 0.0
    %235 = vmatprep.subr.mxu0 0.0
    %236 = vmatpush1.msra.mxu0 0.0
    %237 = vmatprep.subr.mxu0 0.0
    %238 = vmatpush1.msra.mxu0 0.0
    %239 = vmatprep.subr.mxu0 0.0
    %240 = vmatpush1.msra.mxu0 0.0
    %241 = vmatprep.subr.mxu0 0.0
    %242 = vmatpush1.msra.mxu0 0.0
    %243 = vmatprep.subr.mxu0 0.0
    %244 = vmatpush1.msra.mxu0 0.0
    %245 = vmatprep.subr.mxu0 0.0
    %246 = vmatpush1.msra.mxu0 0.0
    %247 = vmatprep.subr.mxu0 0.0
    %248 = vmatpush1.msra.mxu0 0.0
    %249 = vmatprep.subr.mxu0 0.0
    %250 = vmatpush1.msra.mxu0 0.0
    %251 = vmatprep.subr.mxu0 0.0
    %252 = vmatpush1.msra.mxu0 0.0
    %253 = vmatprep.subr.mxu0 0.0
    %254 = vmatpush1.msra.mxu0 0.0
    %255 = vmatprep.subr.mxu0 0.0
    %256 = vmatpush1.msra.mxu0 0.0
    %257 = vmatprep.subr.mxu0 0.0
    %258 = vmatpush1.msra.mxu0 0.0
    %259 = vmatprep.subr.mxu0 0.0
    %260 = vmatpush1.msra.mxu0 0.0
    %261 = vmatprep.subr.mxu0 0.0
    %262 = vmatpush1.msra.mxu0 0.0
    %263 = vmatprep.mubr.f32.mxu0 0.0
    %264 = vmatmul.mubr.f32.gmra.mrb[0].mxu0 %v94
    %v265 = vpop.f32.mrb[0].mxu0
    %v266 = vadd.f32 0.0, %v265
    %v267 = vpop.f32.mrb[0].mxu0
    %268 = vmatprep.mubr.f32.mxu0 0.0
    %269 = vmatmul.mubr.f32.gmra.mrb[0].mxu0 %v97
    %v270 = vpop.f32.mrb[0].mxu0
    %v271 = vadd.f32 0.0, %v270
    %v272 = vpop.f32.mrb[0].mxu0
    %273 = vmatprep.mubr.f32.mxu0 0.0
    %274 = vmatmul.mubr.f32.gmra.mrb[0].mxu0 %v100
    %v275 = vpop.f32.mrb[0].mxu0
    %v276 = vadd.f32 0.0, %v275
    %v277 = vpop.f32.mrb[0].mxu0
    %278 = vmatprep.mubr.f32.mxu0 0.0
    %279 = vmatmul.mubr.f32.gmra.mrb[0].mxu0 %v103
    %v280 = vpop.f32.mrb[0].mxu0
    %v281 = vadd.f32 0.0, %v280
    %v282 = vpop.f32.mrb[0].mxu0
    %283 = vdwg.mxu0
    %vm284 = vcmask 261120
    %v286 = vsel %vm284, %v76, 0
    %v289 = vsel %vm284, %v77, 0
    %v292 = vsel %vm284, %v78, 0
    %v295 = vsel %vm284, %v79, 0
    %297 = vmatprep.subr.mxu0 0.0
    %298 = vmatpush1.msra.mxu0 %v172
    %299 = vmatprep.subr.mxu0 0.0
    %300 = vmatpush1.msra.mxu0 %v177
    %301 = vmatprep.subr.mxu0 0.0
    %302 = vmatpush1.msra.mxu0 %v182
    %303 = vmatprep.subr.mxu0 0.0
    %304 = vmatpush1.msra.mxu0 %v187
    %305 = vmatprep.subr.mxu0 0.0
    %306 = vmatpush1.msra.mxu0 0.0
    %307 = vmatprep.subr.mxu0 0.0
    %308 = vmatpush1.msra.mxu0 0.0
    %309 = vmatprep.subr.mxu0 0.0
    %310 = vmatpush1.msra.mxu0 0.0
    %311 = vmatprep.subr.mxu0 0.0
    %312 = vmatpush1.msra.mxu0 0.0
    %313 = vmatprep.subr.mxu0 0.0
    %314 = vmatpush1.msra.mxu0 0.0
    %315 = vmatprep.subr.mxu0 0.0
    %316 = vmatpush1.msra.mxu0 0.0
    %317 = vmatprep.subr.mxu0 0.0
    %318 = vmatpush1.msra.mxu0 0.0
    %319 = vmatprep.subr.mxu0 0.0
    %320 = vmatpush1.msra.mxu0 0.0
    %321 = vmatprep.subr.mxu0 0.0
    %322 = vmatpush1.msra.mxu0 0.0
    %323 = vmatprep.subr.mxu0 0.0
    %324 = vmatpush1.msra.mxu0 0.0
    %325 = vmatprep.subr.mxu0 0.0
    %326 = vmatpush1.msra.mxu0 0.0
    %327 = vmatprep.subr.mxu0 0.0
    %328 = vmatpush1.msra.mxu0 0.0
    %329 = vmatprep.subr.mxu0 0.0
    %330 = vmatpush1.msra.mxu0 0.0
    %331 = vmatprep.subr.mxu0 0.0
    %332 = vmatpush1.msra.mxu0 0.0
    %333 = vmatprep.subr.mxu0 0.0
    %334 = vmatpush1.msra.mxu0 0.0
    %335 = vmatprep.subr.mxu0 0.0
    %336 = vmatpush1.msra.mxu0 0.0
    %337 = vmatprep.subr.mxu0 0.0
    %338 = vmatpush1.msra.mxu0 0.0
    %339 = vmatprep.subr.mxu0 0.0
    %340 = vmatpush1.msra.mxu0 0.0
    %341 = vmatprep.subr.mxu0 0.0
    %342 = vmatpush1.msra.mxu0 0.0
    %343 = vmatprep.subr.mxu0 0.0
    %344 = vmatpush1.msra.mxu0 0.0
    %345 = vmatprep.subr.mxu0 0.0
    %346 = vmatpush1.msra.mxu0 0.0
    %347 = vmatprep.subr.mxu0 0.0
    %348 = vmatpush1.msra.mxu0 0.0
    %349 = vmatprep.subr.mxu0 0.0
    %350 = vmatpush1.msra.mxu0 0.0
    %351 = vmatprep.subr.mxu0 0.0
    %352 = vmatpush1.msra.mxu0 0.0
    %353 = vmatprep.subr.mxu0 0.0
    %354 = vmatpush1.msra.mxu0 0.0
    %355 = vmatprep.subr.mxu0 0.0
    %356 = vmatpush1.msra.mxu0 0.0
    %357 = vmatprep.subr.mxu0 0.0
    %358 = vmatpush1.msra.mxu0 0.0
    %359 = vmatprep.subr.mxu0 0.0
    %360 = vmatpush1.msra.mxu0 0.0
    %361 = vmatprep.mubr.f32.mxu0 0.0
    %362 = vmatmul.mubr.f32.gmra.mrb[0].mxu0 %v286
    %v363 = vpop.f32.mrb[0].mxu0
    %v364 = vadd.f32 %v266, %v363
    %v365 = vpop.f32.mrb[0].mxu0
    %366 = vmatprep.mubr.f32.mxu0 0.0
    %367 = vmatmul.mubr.f32.gmra.mrb[0].mxu0 %v289
    %v368 = vpop.f32.mrb[0].mxu0
    %v369 = vadd.f32 %v271, %v368
    %v370 = vpop.f32.mrb[0].mxu0
    %371 = vmatprep.mubr.f32.mxu0 0.0
    %372 = vmatmul.mubr.f32.gmra.mrb[0].mxu0 %v292
    %v373 = vpop.f32.mrb[0].mxu0
    %v374 = vadd.f32 %v276, %v373
    %v375 = vpop.f32.mrb[0].mxu0
    %376 = vmatprep.mubr.f32.mxu0 0.0
    %377 = vmatmul.mubr.f32.gmra.mrb[0].mxu0 %v295
    %v378 = vpop.f32.mrb[0].mxu0
    %v379 = vadd.f32 %v281, %v378
    %v380 = vpop.f32.mrb[0].mxu0
    %381 = vdwg.mxu0
    %s382 = scalar_lea.vmem %s5, 128
    %v383 = vld [vmem:[%s382] sm:$0xff]
    %v384 = vld [vmem:[%s382 + $0x8] sm:$0xff]
    %v385 = vld [vmem:[%s382 + $0x10] sm:$0xff]
    %v386 = vld [vmem:[%s382 + $0x18] sm:$0xff]
    %v387 = vld [vmem:[%s382 + $0x20] sm:$0xff]
    %v388 = vld [vmem:[%s382 + $0x28] sm:$0xff]
    %v389 = vld [vmem:[%s382 + $0x30] sm:$0xff]
    %v390 = vld [vmem:[%s382 + $0x38] sm:$0xff]
    %391 = vmatprep.subr.mxu0 0.0
    %392 = vmatpush1.msra.mxu0 %v383
    %393 = vmatprep.subr.mxu0 0.0
    %394 = vmatpush1.msra.mxu0 %v384
    %395 = vmatprep.subr.mxu0 0.0
    %396 = vmatpush1.msra.mxu0 %v385
    %397 = vmatprep.subr.mxu0 0.0
    %398 = vmatpush1.msra.mxu0 %v386
    %399 = vmatprep.subr.mxu0 0.0
    %400 = vmatpush1.msra.mxu0 %v387
    %401 = vmatprep.subr.mxu0 0.0
    %402 = vmatpush1.msra.mxu0 %v388
    %403 = vmatprep.subr.mxu0 0.0
    %404 = vmatpush1.msra.mxu0 %v389
    %405 = vmatprep.subr.mxu0 0.0
    %406 = vmatpush1.msra.mxu0 %v390
    %407 = vmatprep.subr.mxu0 0.0
    %408 = vmatpush1.msra.mxu0 0.0
    %409 = vmatprep.subr.mxu0 0.0
    %410 = vmatpush1.msra.mxu0 0.0
    %411 = vmatprep.subr.mxu0 0.0
    %412 = vmatpush1.msra.mxu0 0.0
    %413 = vmatprep.subr.mxu0 0.0
    %414 = vmatpush1.msra.mxu0 0.0
    %415 = vmatprep.subr.mxu0 0.0
    %416 = vmatpush1.msra.mxu0 0.0
    %417 = vmatprep.subr.mxu0 0.0
    %418 = vmatpush1.msra.mxu0 0.0
    %419 = vmatprep.subr.mxu0 0.0
    %420 = vmatpush1.msra.mxu0 0.0
    %421 = vmatprep.subr.mxu0 0.0
    %422 = vmatpush1.msra.mxu0 0.0
    %423 = vmatprep.subr.mxu0 0.0
    %424 = vmatpush1.msra.mxu0 0.0
    %425 = vmatprep.subr.mxu0 0.0
    %426 = vmatpush1.msra.mxu0 0.0
    %427 = vmatprep.subr.mxu0 0.0
    %428 = vmatpush1.msra.mxu0 0.0
    %429 = vmatprep.subr.mxu0 0.0
    %430 = vmatpush1.msra.mxu0 0.0
    %431 = vmatprep.subr.mxu0 0.0
    %432 = vmatpush1.msra.mxu0 0.0
    %433 = vmatprep.subr.mxu0 0.0
    %434 = vmatpush1.msra.mxu0 0.0
    %435 = vmatprep.subr.mxu0 0.0
    %436 = vmatpush1.msra.mxu0 0.0
    %437 = vmatprep.subr.mxu0 0.0
    %438 = vmatpush1.msra.mxu0 0.0
    %439 = vmatprep.subr.mxu0 0.0
    %440 = vmatpush1.msra.mxu0 0.0
    %441 = vmatprep.subr.mxu0 0.0
    %442 = vmatpush1.msra.mxu0 0.0
    %443 = vmatprep.subr.mxu0 0.0
    %444 = vmatpush1.msra.mxu0 0.0
    %445 = vmatprep.subr.mxu0 0.0
    %446 = vmatpush1.msra.mxu0 0.0
    %447 = vmatprep.subr.mxu0 0.0
    %448 = vmatpush1.msra.mxu0 0.0
    %449 = vmatprep.subr.mxu0 0.0
    %450 = vmatpush1.msra.mxu0 0.0
    %451 = vmatprep.subr.mxu0 0.0
    %452 = vmatpush1.msra.mxu0 0.0
    %453 = vmatprep.subr.mxu0 0.0
    %454 = vmatpush1.msra.mxu0 0.0
    %455 = vmatprep.mubr.f32.mxu0 0.0
    %456 = vmatmul.mubr.f32.gmra.mrb[0].mxu0 %v94
    %v457 = vpop.f32.mrb[0].mxu0
    %v458 = vadd.f32 0.0, %v457
    %v459 = vpop.f32.mrb[0].mxu0
    %460 = vmatprep.mubr.f32.mxu0 0.0
    %461 = vmatmul.mubr.f32.gmra.mrb[0].mxu0 %v97
    %v462 = vpop.f32.mrb[0].mxu0
    %v463 = vadd.f32 0.0, %v462
    %v464 = vpop.f32.mrb[0].mxu0
    %465 = vmatprep.mubr.f32.mxu0 0.0
    %466 = vmatmul.mubr.f32.gmra.mrb[0].mxu0 %v100
    %v467 = vpop.f32.mrb[0].mxu0
    %v468 = vadd.f32 0.0, %v467
    %v469 = vpop.f32.mrb[0].mxu0
    %470 = vmatprep.mubr.f32.mxu0 0.0
    %471 = vmatmul.mubr.f32.gmra.mrb[0].mxu0 %v103
    %v472 = vpop.f32.mrb[0].mxu0
    %v473 = vadd.f32 0.0, %v472
    %v474 = vpop.f32.mrb[0].mxu0
    %475 = vdwg.mxu0
    %v477 = vsel %vm284, %v80, 0
    %v480 = vsel %vm284, %v81, 0
    %v483 = vsel %vm284, %v82, 0
    %v486 = vsel %vm284, %v83, 0
    %488 = vmatprep.subr.mxu0 0.0
    %489 = vmatpush1.msra.mxu0 %v458
    %490 = vmatprep.subr.mxu0 0.0
    %491 = vmatpush1.msra.mxu0 %v463
    %492 = vmatprep.subr.mxu0 0.0
    %493 = vmatpush1.msra.mxu0 %v468
    %494 = vmatprep.subr.mxu0 0.0
    %495 = vmatpush1.msra.mxu0 %v473
    %496 = vmatprep.subr.mxu0 0.0
    %497 = vmatpush1.msra.mxu0 0.0
    %498 = vmatprep.subr.mxu0 0.0
    %499 = vmatpush1.msra.mxu0 0.0
    %500 = vmatprep.subr.mxu0 0.0
    %501 = vmatpush1.msra.mxu0 0.0
    %502 = vmatprep.subr.mxu0 0.0
    %503 = vmatpush1.msra.mxu0 0.0
    %504 = vmatprep.subr.mxu0 0.0
    %505 = vmatpush1.msra.mxu0 0.0
    %506 = vmatprep.subr.mxu0 0.0
    %507 = vmatpush1.msra.mxu0 0.0
    %508 = vmatprep.subr.mxu0 0.0
    %509 = vmatpush1.msra.mxu0 0.0
    %510 = vmatprep.subr.mxu0 0.0
    %511 = vmatpush1.msra.mxu0 0.0
    %512 = vmatprep.subr.mxu0 0.0
    %513 = vmatpush1.msra.mxu0 0.0
    %514 = vmatprep.subr.mxu0 0.0
    %515 = vmatpush1.msra.mxu0 0.0
    %516 = vmatprep.subr.mxu0 0.0
    %517 = vmatpush1.msra.mxu0 0.0
    %518 = vmatprep.subr.mxu0 0.0
    %519 = vmatpush1.msra.mxu0 0.0
    %520 = vmatprep.subr.mxu0 0.0
    %521 = vmatpush1.msra.mxu0 0.0
    %522 = vmatprep.subr.mxu0 0.0
    %523 = vmatpush1.msra.mxu0 0.0
    %524 = vmatprep.subr.mxu0 0.0
    %525 = vmatpush1.msra.mxu0 0.0
    %526 = vmatprep.subr.mxu0 0.0
    %527 = vmatpush1.msra.mxu0 0.0
    %528 = vmatprep.subr.mxu0 0.0
    %529 = vmatpush1.msra.mxu0 0.0
    %530 = vmatprep.subr.mxu0 0.0
    %531 = vmatpush1.msra.mxu0 0.0
    %532 = vmatprep.subr.mxu0 0.0
    %533 = vmatpush1.msra.mxu0 0.0
    %534 = vmatprep.subr.mxu0 0.0
    %535 = vmatpush1.msra.mxu0 0.0
    %536 = vmatprep.subr.mxu0 0.0
    %537 = vmatpush1.msra.mxu0 0.0
    %538 = vmatprep.subr.mxu0 0.0
    %539 = vmatpush1.msra.mxu0 0.0
    %540 = vmatprep.subr.mxu0 0.0
    %541 = vmatpush1.msra.mxu0 0.0
    %542 = vmatprep.subr.mxu0 0.0
    %543 = vmatpush1.msra.mxu0 0.0
    %544 = vmatprep.subr.mxu0 0.0
    %545 = vmatpush1.msra.mxu0 0.0
    %546 = vmatprep.subr.mxu0 0.0
    %547 = vmatpush1.msra.mxu0 0.0
    %548 = vmatprep.subr.mxu0 0.0
    %549 = vmatpush1.msra.mxu0 0.0
    %550 = vmatprep.subr.mxu0 0.0
    %551 = vmatpush1.msra.mxu0 0.0
    %552 = vmatprep.mubr.f32.mxu0 0.0
    %553 = vmatmul.mubr.f32.gmra.mrb[0].mxu0 %v477
    %v554 = vpop.f32.mrb[0].mxu0
    %v555 = vadd.f32 0.0, %v554
    %v556 = vpop.f32.mrb[0].mxu0
    %557 = vmatprep.mubr.f32.mxu0 0.0
    %558 = vmatmul.mubr.f32.gmra.mrb[0].mxu0 %v480
    %v559 = vpop.f32.mrb[0].mxu0
    %v560 = vadd.f32 0.0, %v559
    %v561 = vpop.f32.mrb[0].mxu0
    %562 = vmatprep.mubr.f32.mxu0 0.0
    %563 = vmatmul.mubr.f32.gmra.mrb[0].mxu0 %v483
    %v564 = vpop.f32.mrb[0].mxu0
    %v565 = vadd.f32 0.0, %v564
    %v566 = vpop.f32.mrb[0].mxu0
    %567 = vmatprep.mubr.f32.mxu0 0.0
    %568 = vmatmul.mubr.f32.gmra.mrb[0].mxu0 %v486
    %v569 = vpop.f32.mrb[0].mxu0
    %v570 = vadd.f32 0.0, %v569
    %v571 = vpop.f32.mrb[0].mxu0
    %572 = vdwg.mxu0
    %v573 = vadd.f32 %v364, %v555
    %v574 = vadd.f32 %v369, %v560
    %v575 = vadd.f32 %v374, %v565
    %v576 = vadd.f32 %v379, %v570
    %v577 = vld [vmem:[%s6] sm:$0x1]
    %v579 = vlaneseq
    %v580 = vshrl.u32 %v579, 7
    %v581 = vsub.s32 0, %v580
    %v582 = vrot.slane %v577, %v581
    %v584 = vadd.f32 %v573, %v582
    %v585 = vadd.f32 %v574, %v582
    %v586 = vadd.f32 %v575, %v582
    %v587 = vadd.f32 %v576, %v582
    %v588 = vmax.f32 %v584, 0.0
    %v589 = vmax.f32 %v585, 0.0
    %v590 = vmax.f32 %v586, 0.0
    %v591 = vmax.f32 %v587, 0.0
    %v592 = vld [vmem:[%s7] sm:$0xff]
    %v593 = vld [vmem:[%s7 + $0x8] sm:$0xff]
    %v594 = vld [vmem:[%s7 + $0x10] sm:$0xff]
    %v595 = vld [vmem:[%s7 + $0x18] sm:$0xff]
    %v596 = vld [vmem:[%s8] sm:$0x1]
    %v598 = vlaneseq
    %v599 = vshrl.u32 %v598, 7
    %v600 = vsub.s32 0, %v599
    %v601 = vrot.slane %v596, %v600
    %v604 = vsel %vm284, %v588, 0
    %v607 = vsel %vm284, %v589, 0
    %v610 = vsel %vm284, %v590, 0
    %v613 = vsel %vm284, %v591, 0
    %615 = vmatprep.subr.mxu0 0.0
    %616 = vmatpush1.msra.mxu0 %v592
    %617 = vmatprep.subr.mxu0 0.0
    %618 = vmatpush1.msra.mxu0 %v593
    %619 = vmatprep.subr.mxu0 0.0
    %620 = vmatpush1.msra.mxu0 %v594
    %621 = vmatprep.subr.mxu0 0.0
    %622 = vmatpush1.msra.mxu0 %v595
    %623 = vmatprep.subr.mxu0 0.0
    %624 = vmatpush1.msra.mxu0 0.0
    %625 = vmatprep.subr.mxu0 0.0
    %626 = vmatpush1.msra.mxu0 0.0
    %627 = vmatprep.subr.mxu0 0.0
    %628 = vmatpush1.msra.mxu0 0.0
    %629 = vmatprep.subr.mxu0 0.0
    %630 = vmatpush1.msra.mxu0 0.0
    %631 = vmatprep.subr.mxu0 0.0
    %632 = vmatpush1.msra.mxu0 0.0
    %633 = vmatprep.subr.mxu0 0.0
    %634 = vmatpush1.msra.mxu0 0.0
    %635 = vmatprep.subr.mxu0 0.0
    %636 = vmatpush1.msra.mxu0 0.0
    %637 = vmatprep.subr.mxu0 0.0
    %638 = vmatpush1.msra.mxu0 0.0
    %639 = vmatprep.subr.mxu0 0.0
    %640 = vmatpush1.msra.mxu0 0.0
    %641 = vmatprep.subr.mxu0 0.0
    %642 = vmatpush1.msra.mxu0 0.0
    %643 = vmatprep.subr.mxu0 0.0
    %644 = vmatpush1.msra.mxu0 0.0
    %645 = vmatprep.subr.mxu0 0.0
    %646 = vmatpush1.msra.mxu0 0.0
    %647 = vmatprep.subr.mxu0 0.0
    %648 = vmatpush1.msra.mxu0 0.0
    %649 = vmatprep.subr.mxu0 0.0
    %650 = vmatpush1.msra.mxu0 0.0
    %651 = vmatprep.subr.mxu0 0.0
    %652 = vmatpush1.msra.mxu0 0.0
    %653 = vmatprep.subr.mxu0 0.0
    %654 = vmatpush1.msra.mxu0 0.0
    %655 = vmatprep.subr.mxu0 0.0
    %656 = vmatpush1.msra.mxu0 0.0
    %657 = vmatprep.subr.mxu0 0.0
    %658 = vmatpush1.msra.mxu0 0.0
    %659 = vmatprep.subr.mxu0 0.0
    %660 = vmatpush1.msra.mxu0 0.0
    %661 = vmatprep.subr.mxu0 0.0
    %662 = vmatpush1.msra.mxu0 0.0
    %663 = vmatprep.subr.mxu0 0.0
    %664 = vmatpush1.msra.mxu0 0.0
    %665 = vmatprep.subr.mxu0 0.0
    %666 = vmatpush1.msra.mxu0 0.0
    %667 = vmatprep.subr.mxu0 0.0
    %668 = vmatpush1.msra.mxu0 0.0
    %669 = vmatprep.subr.mxu0 0.0
    %670 = vmatpush1.msra.mxu0 0.0
    %671 = vmatprep.subr.mxu0 0.0
    %672 = vmatpush1.msra.mxu0 0.0
    %673 = vmatprep.subr.mxu0 0.0
    %674 = vmatpush1.msra.mxu0 0.0
    %675 = vmatprep.subr.mxu0 0.0
    %676 = vmatpush1.msra.mxu0 0.0
    %677 = vmatprep.subr.mxu0 0.0
    %678 = vmatpush1.msra.mxu0 0.0
    %679 = vmatprep.mubr.f32.mxu0 0.0
    %680 = vmatmul.mubr.f32.gmra.mrb[0].mxu0 %v604
    %v681 = vpop.f32.mrb[0].mxu0
    %v682 = vadd.f32 %v601, %v681
    %v683 = vpop.f32.mrb[0].mxu0
    %684 = vmatprep.mubr.f32.mxu0 0.0
    %685 = vmatmul.mubr.f32.gmra.mrb[0].mxu0 %v607
    %v686 = vpop.f32.mrb[0].mxu0
    %v687 = vadd.f32 %v601, %v686
    %v688 = vpop.f32.mrb[0].mxu0
    %689 = vmatprep.mubr.f32.mxu0 0.0
    %690 = vmatmul.mubr.f32.gmra.mrb[0].mxu0 %v610
    %v691 = vpop.f32.mrb[0].mxu0
    %v692 = vadd.f32 %v601, %v691
    %v693 = vpop.f32.mrb[0].mxu0
    %694 = vmatprep.mubr.f32.mxu0 0.0
    %695 = vmatmul.mubr.f32.gmra.mrb[0].mxu0 %v613
    %v696 = vpop.f32.mrb[0].mxu0
    %v697 = vadd.f32 %v601, %v696
    %v698 = vpop.f32.mrb[0].mxu0
    %699 = vdwg.mxu0
    %v700 = vmax.f32 %v682, 0.0
    %v701 = vmax.f32 %v687, 0.0
    %v702 = vmax.f32 %v692, 0.0
    %v703 = vmax.f32 %v697, 0.0
    %v704 = vld [vmem:[%s9] sm:$0xff]
    %v705 = vld [vmem:[%s9 + $0x8] sm:$0xff]
    %v706 = vld [vmem:[%s9 + $0x10] sm:$0xff]
    %v707 = vld [vmem:[%s9 + $0x18] sm:$0xff]
    %v709 = vsel %vm284, %v700, 0
    %v712 = vsel %vm284, %v701, 0
    %v715 = vsel %vm284, %v702, 0
    %v718 = vsel %vm284, %v703, 0
    %720 = vmatprep.subr.mxu0 0.0
    %721 = vmatpush1.msra.mxu0 %v704
    %722 = vmatprep.subr.mxu0 0.0
    %723 = vmatpush1.msra.mxu0 %v705
    %724 = vmatprep.subr.mxu0 0.0
    %725 = vmatpush1.msra.mxu0 %v706
    %726 = vmatprep.subr.mxu0 0.0
    %727 = vmatpush1.msra.mxu0 %v707
    %728 = vmatprep.subr.mxu0 0.0
    %729 = vmatpush1.msra.mxu0 0.0
    %730 = vmatprep.subr.mxu0 0.0
    %731 = vmatpush1.msra.mxu0 0.0
    %732 = vmatprep.subr.mxu0 0.0
    %733 = vmatpush1.msra.mxu0 0.0
    %734 = vmatprep.subr.mxu0 0.0
    %735 = vmatpush1.msra.mxu0 0.0
    %736 = vmatprep.subr.mxu0 0.0
    %737 = vmatpush1.msra.mxu0 0.0
    %738 = vmatprep.subr.mxu0 0.0
    %739 = vmatpush1.msra.mxu0 0.0
    %740 = vmatprep.subr.mxu0 0.0
    %741 = vmatpush1.msra.mxu0 0.0
    %742 = vmatprep.subr.mxu0 0.0
    %743 = vmatpush1.msra.mxu0 0.0
    %744 = vmatprep.subr.mxu0 0.0
    %745 = vmatpush1.msra.mxu0 0.0
    %746 = vmatprep.subr.mxu0 0.0
    %747 = vmatpush1.msra.mxu0 0.0
    %748 = vmatprep.subr.mxu0 0.0
    %749 = vmatpush1.msra.mxu0 0.0
    %750 = vmatprep.subr.mxu0 0.0
    %751 = vmatpush1.msra.mxu0 0.0
    %752 = vmatprep.subr.mxu0 0.0
    %753 = vmatpush1.msra.mxu0 0.0
    %754 = vmatprep.subr.mxu0 0.0
    %755 = vmatpush1.msra.mxu0 0.0
    %756 = vmatprep.subr.mxu0 0.0
    %757 = vmatpush1.msra.mxu0 0.0
    %758 = vmatprep.subr.mxu0 0.0
    %759 = vmatpush1.msra.mxu0 0.0
    %760 = vmatprep.subr.mxu0 0.0
    %761 = vmatpush1.msra.mxu0 0.0
    %762 = vmatprep.subr.mxu0 0.0
    %763 = vmatpush1.msra.mxu0 0.0
    %764 = vmatprep.subr.mxu0 0.0
    %765 = vmatpush1.msra.mxu0 0.0
    %766 = vmatprep.subr.mxu0 0.0
    %767 = vmatpush1.msra.mxu0 0.0
    %768 = vmatprep.subr.mxu0 0.0
    %769 = vmatpush1.msra.mxu0 0.0
    %770 = vmatprep.subr.mxu0 0.0
    %771 = vmatpush1.msra.mxu0 0.0
    %772 = vmatprep.subr.mxu0 0.0
    %773 = vmatpush1.msra.mxu0 0.0
    %774 = vmatprep.subr.mxu0 0.0
    %775 = vmatpush1.msra.mxu0 0.0
    %776 = vmatprep.subr.mxu0 0.0
    %777 = vmatpush1.msra.mxu0 0.0
    %778 = vmatprep.subr.mxu0 0.0
    %779 = vmatpush1.msra.mxu0 0.0
    %780 = vmatprep.subr.mxu0 0.0
    %781 = vmatpush1.msra.mxu0 0.0
    %782 = vmatprep.subr.mxu0 0.0
    %783 = vmatpush1.msra.mxu0 0.0
    %784 = vmatprep.mubr.f32.mxu0 0.0
    %785 = vmatmul.mubr.f32.gmra.mrb[0].mxu0 %v709
    %v786 = vpop.f32.mrb[0].mxu0
    %v787 = vadd.f32 0.0, %v786
    %v788 = vpop.f32.mrb[0].mxu0
    %789 = vmatprep.mubr.f32.mxu0 0.0
    %790 = vmatmul.mubr.f32.gmra.mrb[0].mxu0 %v712
    %v791 = vpop.f32.mrb[0].mxu0
    %v792 = vadd.f32 0.0, %v791
    %v793 = vpop.f32.mrb[0].mxu0
    %794 = vmatprep.mubr.f32.mxu0 0.0
    %795 = vmatmul.mubr.f32.gmra.mrb[0].mxu0 %v715
    %v796 = vpop.f32.mrb[0].mxu0
    %v797 = vadd.f32 0.0, %v796
    %v798 = vpop.f32.mrb[0].mxu0
    %799 = vmatprep.mubr.f32.mxu0 0.0
    %800 = vmatmul.mubr.f32.gmra.mrb[0].mxu0 %v718
    %v801 = vpop.f32.mrb[0].mxu0
    %v802 = vadd.f32 0.0, %v801
    %v803 = vpop.f32.mrb[0].mxu0
    %804 = vdwg.mxu0
    %s805 = scalar_lea.vmem %s9, 32
    %v806 = vld [vmem:[%s805] sm:$0xff]
    %v807 = vld [vmem:[%s805 + $0x8] sm:$0xff]
    %v808 = vld [vmem:[%s805 + $0x10] sm:$0xff]
    %v809 = vld [vmem:[%s805 + $0x18] sm:$0xff]
    %810 = vmatprep.subr.mxu0 0.0
    %811 = vmatpush1.msra.mxu0 %v806
    %812 = vmatprep.subr.mxu0 0.0
    %813 = vmatpush1.msra.mxu0 %v807
    %814 = vmatprep.subr.mxu0 0.0
    %815 = vmatpush1.msra.mxu0 %v808
    %816 = vmatprep.subr.mxu0 0.0
    %817 = vmatpush1.msra.mxu0 %v809
    %818 = vmatprep.subr.mxu0 0.0
    %819 = vmatpush1.msra.mxu0 0.0
    %820 = vmatprep.subr.mxu0 0.0
    %821 = vmatpush1.msra.mxu0 0.0
    %822 = vmatprep.subr.mxu0 0.0
    %823 = vmatpush1.msra.mxu0 0.0
    %824 = vmatprep.subr.mxu0 0.0
    %825 = vmatpush1.msra.mxu0 0.0
    %826 = vmatprep.subr.mxu0 0.0
    %827 = vmatpush1.msra.mxu0 0.0
    %828 = vmatprep.subr.mxu0 0.0
    %829 = vmatpush1.msra.mxu0 0.0
    %830 = vmatprep.subr.mxu0 0.0
    %831 = vmatpush1.msra.mxu0 0.0
    %832 = vmatprep.subr.mxu0 0.0
    %833 = vmatpush1.msra.mxu0 0.0
    %834 = vmatprep.subr.mxu0 0.0
    %835 = vmatpush1.msra.mxu0 0.0
    %836 = vmatprep.subr.mxu0 0.0
    %837 = vmatpush1.msra.mxu0 0.0
    %838 = vmatprep.subr.mxu0 0.0
    %839 = vmatpush1.msra.mxu0 0.0
    %840 = vmatprep.subr.mxu0 0.0
    %841 = vmatpush1.msra.mxu0 0.0
    %842 = vmatprep.subr.mxu0 0.0
    %843 = vmatpush1.msra.mxu0 0.0
    %844 = vmatprep.subr.mxu0 0.0
    %845 = vmatpush1.msra.mxu0 0.0
    %846 = vmatprep.subr.mxu0 0.0
    %847 = vmatpush1.msra.mxu0 0.0
    %848 = vmatprep.subr.mxu0 0.0
    %849 = vmatpush1.msra.mxu0 0.0
    %850 = vmatprep.subr.mxu0 0.0
    %851 = vmatpush1.msra.mxu0 0.0
    %852 = vmatprep.subr.mxu0 0.0
    %853 = vmatpush1.msra.mxu0 0.0
    %854 = vmatprep.subr.mxu0 0.0
    %855 = vmatpush1.msra.mxu0 0.0
    %856 = vmatprep.subr.mxu0 0.0
    %857 = vmatpush1.msra.mxu0 0.0
    %858 = vmatprep.subr.mxu0 0.0
    %859 = vmatpush1.msra.mxu0 0.0
    %860 = vmatprep.subr.mxu0 0.0
    %861 = vmatpush1.msra.mxu0 0.0
    %862 = vmatprep.subr.mxu0 0.0
    %863 = vmatpush1.msra.mxu0 0.0
    %864 = vmatprep.subr.mxu0 0.0
    %865 = vmatpush1.msra.mxu0 0.0
    %866 = vmatprep.subr.mxu0 0.0
    %867 = vmatpush1.msra.mxu0 0.0
    %868 = vmatprep.subr.mxu0 0.0
    %869 = vmatpush1.msra.mxu0 0.0
    %870 = vmatprep.subr.mxu0 0.0
    %871 = vmatpush1.msra.mxu0 0.0
    %872 = vmatprep.subr.mxu0 0.0
    %873 = vmatpush1.msra.mxu0 0.0
    %874 = vmatprep.mubr.f32.mxu0 0.0
    %875 = vmatmul.mubr.f32.gmra.mrb[0].mxu0 %v709
    %v876 = vpop.f32.mrb[0].mxu0
    %v877 = vadd.f32 0.0, %v876
    %v878 = vpop.f32.mrb[0].mxu0
    %879 = vmatprep.mubr.f32.mxu0 0.0
    %880 = vmatmul.mubr.f32.gmra.mrb[0].mxu0 %v712
    %v881 = vpop.f32.mrb[0].mxu0
    %v882 = vadd.f32 0.0, %v881
    %v883 = vpop.f32.mrb[0].mxu0
    %884 = vmatprep.mubr.f32.mxu0 0.0
    %885 = vmatmul.mubr.f32.gmra.mrb[0].mxu0 %v715
    %v886 = vpop.f32.mrb[0].mxu0
    %v887 = vadd.f32 0.0, %v886
    %v888 = vpop.f32.mrb[0].mxu0
    %889 = vmatprep.mubr.f32.mxu0 0.0
    %890 = vmatmul.mubr.f32.gmra.mrb[0].mxu0 %v718
    %v891 = vpop.f32.mrb[0].mxu0
    %v892 = vadd.f32 0.0, %v891
    %v893 = vpop.f32.mrb[0].mxu0
    %894 = vdwg.mxu0
    %895 = vmatprep.subr.mxu0 0.0
    %896 = vmatpush1.msra.mxu0 %v787
    %897 = vmatprep.subr.mxu0 0.0
    %898 = vmatpush1.msra.mxu0 %v792
    %899 = vmatprep.subr.mxu0 0.0
    %900 = vmatpush1.msra.mxu0 %v797
    %901 = vmatprep.subr.mxu0 0.0
    %902 = vmatpush1.msra.mxu0 %v802
    %903 = vmatprep.subr.mxu0 0.0
    %904 = vmatpush1.msra.mxu0 0.0
    %905 = vmatprep.subr.mxu0 0.0
    %906 = vmatpush1.msra.mxu0 0.0
    %907 = vmatprep.subr.mxu0 0.0
    %908 = vmatpush1.msra.mxu0 0.0
    %909 = vmatprep.subr.mxu0 0.0
    %910 = vmatpush1.msra.mxu0 0.0
    %911 = vmatprep.subr.mxu0 0.0
    %912 = vmatpush1.msra.mxu0 0.0
    %913 = vmatprep.subr.mxu0 0.0
    %914 = vmatpush1.msra.mxu0 0.0
    %915 = vmatprep.subr.mxu0 0.0
    %916 = vmatpush1.msra.mxu0 0.0
    %917 = vmatprep.subr.mxu0 0.0
    %918 = vmatpush1.msra.mxu0 0.0
    %919 = vmatprep.subr.mxu0 0.0
    %920 = vmatpush1.msra.mxu0 0.0
    %921 = vmatprep.subr.mxu0 0.0
    %922 = vmatpush1.msra.mxu0 0.0
    %923 = vmatprep.subr.mxu0 0.0
    %924 = vmatpush1.msra.mxu0 0.0
    %925 = vmatprep.subr.mxu0 0.0
    %926 = vmatpush1.msra.mxu0 0.0
    %927 = vmatprep.subr.mxu0 0.0
    %928 = vmatpush1.msra.mxu0 0.0
    %929 = vmatprep.subr.mxu0 0.0
    %930 = vmatpush1.msra.mxu0 0.0
    %931 = vmatprep.subr.mxu0 0.0
    %932 = vmatpush1.msra.mxu0 0.0
    %933 = vmatprep.subr.mxu0 0.0
    %934 = vmatpush1.msra.mxu0 0.0
    %935 = vmatprep.subr.mxu0 0.0
    %936 = vmatpush1.msra.mxu0 0.0
    %937 = vmatprep.subr.mxu0 0.0
    %938 = vmatpush1.msra.mxu0 0.0
    %939 = vmatprep.subr.mxu0 0.0
    %940 = vmatpush1.msra.mxu0 0.0
    %941 = vmatprep.subr.mxu0 0.0
    %942 = vmatpush1.msra.mxu0 0.0
    %943 = vmatprep.subr.mxu0 0.0
    %944 = vmatpush1.msra.mxu0 0.0
    %945 = vmatprep.subr.mxu0 0.0
    %946 = vmatpush1.msra.mxu0 0.0
    %947 = vmatprep.subr.mxu0 0.0
    %948 = vmatpush1.msra.mxu0 0.0
    %949 = vmatprep.subr.mxu0 0.0
    %950 = vmatpush1.msra.mxu0 0.0
    %951 = vmatprep.subr.mxu0 0.0
    %952 = vmatpush1.msra.mxu0 0.0
    %953 = vmatprep.subr.mxu0 0.0
    %954 = vmatpush1.msra.mxu0 0.0
    %955 = vmatprep.subr.mxu0 0.0
    %956 = vmatpush1.msra.mxu0 0.0
    %957 = vmatprep.subr.mxu0 0.0
    %958 = vmatpush1.msra.mxu0 0.0
    %959 = vmatprep.mubr.f32.mxu0 0.0
    %960 = vmatmul.mubr.f32.gmra.mrb[0].mxu0 %v286
    %v961 = vpop.f32.mrb[0].mxu0
    %v962 = vadd.f32 %v877, %v961
    %v963 = vpop.f32.mrb[0].mxu0
    %964 = vmatprep.mubr.f32.mxu0 0.0
    %965 = vmatmul.mubr.f32.gmra.mrb[0].mxu0 %v289
    %v966 = vpop.f32.mrb[0].mxu0
    %v967 = vadd.f32 %v882, %v966
    %v968 = vpop.f32.mrb[0].mxu0
    %969 = vmatprep.mubr.f32.mxu0 0.0
    %970 = vmatmul.mubr.f32.gmra.mrb[0].mxu0 %v292
    %v971 = vpop.f32.mrb[0].mxu0
    %v972 = vadd.f32 %v887, %v971
    %v973 = vpop.f32.mrb[0].mxu0
    %974 = vmatprep.mubr.f32.mxu0 0.0
    %975 = vmatmul.mubr.f32.gmra.mrb[0].mxu0 %v295
    %v976 = vpop.f32.mrb[0].mxu0
    %v977 = vadd.f32 %v892, %v976
    %v978 = vpop.f32.mrb[0].mxu0
    %979 = vdwg.mxu0
    %s980 = scalar_lea.vmem %s9, 64
    %v981 = vld [vmem:[%s980] sm:$0xff]
    %v982 = vld [vmem:[%s980 + $0x8] sm:$0xff]
    %v983 = vld [vmem:[%s980 + $0x10] sm:$0xff]
    %v984 = vld [vmem:[%s980 + $0x18] sm:$0xff]
    %985 = vmatprep.subr.mxu0 0.0
    %986 = vmatpush1.msra.mxu0 %v981
    %987 = vmatprep.subr.mxu0 0.0
    %988 = vmatpush1.msra.mxu0 %v982
    %989 = vmatprep.subr.mxu0 0.0
    %990 = vmatpush1.msra.mxu0 %v983
    %991 = vmatprep.subr.mxu0 0.0
    %992 = vmatpush1.msra.mxu0 %v984
    %993 = vmatprep.subr.mxu0 0.0
    %994 = vmatpush1.msra.mxu0 0.0
    %995 = vmatprep.subr.mxu0 0.0
    %996 = vmatpush1.msra.mxu0 0.0
    %997 = vmatprep.subr.mxu0 0.0
    %998 = vmatpush1.msra.mxu0 0.0
    %999 = vmatprep.subr.mxu0 0.0
    %1000 = vmatpush1.msra.mxu0 0.0
    %1001 = vmatprep.subr.mxu0 0.0
    %1002 = vmatpush1.msra.mxu0 0.0
    %1003 = vmatprep.subr.mxu0 0.0
    %1004 = vmatpush1.msra.mxu0 0.0
    %1005 = vmatprep.subr.mxu0 0.0
    %1006 = vmatpush1.msra.mxu0 0.0
    %1007 = vmatprep.subr.mxu0 0.0
    %1008 = vmatpush1.msra.mxu0 0.0
    %1009 = vmatprep.subr.mxu0 0.0
    %1010 = vmatpush1.msra.mxu0 0.0
    %1011 = vmatprep.subr.mxu0 0.0
    %1012 = vmatpush1.msra.mxu0 0.0
    %1013 = vmatprep.subr.mxu0 0.0
    %1014 = vmatpush1.msra.mxu0 0.0
    %1015 = vmatprep.subr.mxu0 0.0
    %1016 = vmatpush1.msra.mxu0 0.0
    %1017 = vmatprep.subr.mxu0 0.0
    %1018 = vmatpush1.msra.mxu0 0.0
    %1019 = vmatprep.subr.mxu0 0.0
    %1020 = vmatpush1.msra.mxu0 0.0
    %1021 = vmatprep.subr.mxu0 0.0
    %1022 = vmatpush1.msra.mxu0 0.0
    %1023 = vmatprep.subr.mxu0 0.0
    %1024 = vmatpush1.msra.mxu0 0.0
    %1025 = vmatprep.subr.mxu0 0.0
    %1026 = vmatpush1.msra.mxu0 0.0
    %1027 = vmatprep.subr.mxu0 0.0
    %1028 = vmatpush1.msra.mxu0 0.0
    %1029 = vmatprep.subr.mxu0 0.0
    %1030 = vmatpush1.msra.mxu0 0.0
    %1031 = vmatprep.subr.mxu0 0.0
    %1032 = vmatpush1.msra.mxu0 0.0
    %1033 = vmatprep.subr.mxu0 0.0
    %1034 = vmatpush1.msra.mxu0 0.0
    %1035 = vmatprep.subr.mxu0 0.0
    %1036 = vmatpush1.msra.mxu0 0.0
    %1037 = vmatprep.subr.mxu0 0.0
    %1038 = vmatpush1.msra.mxu0 0.0
    %1039 = vmatprep.subr.mxu0 0.0
    %1040 = vmatpush1.msra.mxu0 0.0
    %1041 = vmatprep.subr.mxu0 0.0
    %1042 = vmatpush1.msra.mxu0 0.0
    %1043 = vmatprep.subr.mxu0 0.0
    %1044 = vmatpush1.msra.mxu0 0.0
    %1045 = vmatprep.subr.mxu0 0.0
    %1046 = vmatpush1.msra.mxu0 0.0
    %1047 = vmatprep.subr.mxu0 0.0
    %1048 = vmatpush1.msra.mxu0 0.0
    %1049 = vmatprep.mubr.f32.mxu0 0.0
    %1050 = vmatmul.mubr.f32.gmra.mrb[0].mxu0 %v709
    %v1051 = vpop.f32.mrb[0].mxu0
    %v1052 = vadd.f32 0.0, %v1051
    %v1053 = vpop.f32.mrb[0].mxu0
    %1054 = vmatprep.mubr.f32.mxu0 0.0
    %1055 = vmatmul.mubr.f32.gmra.mrb[0].mxu0 %v712
    %v1056 = vpop.f32.mrb[0].mxu0
    %v1057 = vadd.f32 0.0, %v1056
    %v1058 = vpop.f32.mrb[0].mxu0
    %1059 = vmatprep.mubr.f32.mxu0 0.0
    %1060 = vmatmul.mubr.f32.gmra.mrb[0].mxu0 %v715
    %v1061 = vpop.f32.mrb[0].mxu0
    %v1062 = vadd.f32 0.0, %v1061
    %v1063 = vpop.f32.mrb[0].mxu0
    %1064 = vmatprep.mubr.f32.mxu0 0.0
    %1065 = vmatmul.mubr.f32.gmra.mrb[0].mxu0 %v718
    %v1066 = vpop.f32.mrb[0].mxu0
    %v1067 = vadd.f32 0.0, %v1066
    %v1068 = vpop.f32.mrb[0].mxu0
    %1069 = vdwg.mxu0
    %1070 = vmatprep.subr.mxu0 0.0
    %1071 = vmatpush1.msra.mxu0 %v1052
    %1072 = vmatprep.subr.mxu0 0.0
    %1073 = vmatpush1.msra.mxu0 %v1057
    %1074 = vmatprep.subr.mxu0 0.0
    %1075 = vmatpush1.msra.mxu0 %v1062
    %1076 = vmatprep.subr.mxu0 0.0
    %1077 = vmatpush1.msra.mxu0 %v1067
    %1078 = vmatprep.subr.mxu0 0.0
    %1079 = vmatpush1.msra.mxu0 0.0
    %1080 = vmatprep.subr.mxu0 0.0
    %1081 = vmatpush1.msra.mxu0 0.0
    %1082 = vmatprep.subr.mxu0 0.0
    %1083 = vmatpush1.msra.mxu0 0.0
    %1084 = vmatprep.subr.mxu0 0.0
    %1085 = vmatpush1.msra.mxu0 0.0
    %1086 = vmatprep.subr.mxu0 0.0
    %1087 = vmatpush1.msra.mxu0 0.0
    %1088 = vmatprep.subr.mxu0 0.0
    %1089 = vmatpush1.msra.mxu0 0.0
    %1090 = vmatprep.subr.mxu0 0.0
    %1091 = vmatpush1.msra.mxu0 0.0
    %1092 = vmatprep.subr.mxu0 0.0
    %1093 = vmatpush1.msra.mxu0 0.0
    %1094 = vmatprep.subr.mxu0 0.0
    %1095 = vmatpush1.msra.mxu0 0.0
    %1096 = vmatprep.subr.mxu0 0.0
    %1097 = vmatpush1.msra.mxu0 0.0
    %1098 = vmatprep.subr.mxu0 0.0
    %1099 = vmatpush1.msra.mxu0 0.0
    %1100 = vmatprep.subr.mxu0 0.0
    %1101 = vmatpush1.msra.mxu0 0.0
    %1102 = vmatprep.subr.mxu0 0.0
    %1103 = vmatpush1.msra.mxu0 0.0
    %1104 = vmatprep.subr.mxu0 0.0
    %1105 = vmatpush1.msra.mxu0 0.0
    %1106 = vmatprep.subr.mxu0 0.0
    %1107 = vmatpush1.msra.mxu0 0.0
    %1108 = vmatprep.subr.mxu0 0.0
    %1109 = vmatpush1.msra.mxu0 0.0
    %1110 = vmatprep.subr.mxu0 0.0
    %1111 = vmatpush1.msra.mxu0 0.0
    %1112 = vmatprep.subr.mxu0 0.0
    %1113 = vmatpush1.msra.mxu0 0.0
    %1114 = vmatprep.subr.mxu0 0.0
    %1115 = vmatpush1.msra.mxu0 0.0
    %1116 = vmatprep.subr.mxu0 0.0
    %1117 = vmatpush1.msra.mxu0 0.0
    %1118 = vmatprep.subr.mxu0 0.0
    %1119 = vmatpush1.msra.mxu0 0.0
    %1120 = vmatprep.subr.mxu0 0.0
    %1121 = vmatpush1.msra.mxu0 0.0
    %1122 = vmatprep.subr.mxu0 0.0
    %1123 = vmatpush1.msra.mxu0 0.0
    %1124 = vmatprep.subr.mxu0 0.0
    %1125 = vmatpush1.msra.mxu0 0.0
    %1126 = vmatprep.subr.mxu0 0.0
    %1127 = vmatpush1.msra.mxu0 0.0
    %1128 = vmatprep.subr.mxu0 0.0
    %1129 = vmatpush1.msra.mxu0 0.0
    %1130 = vmatprep.subr.mxu0 0.0
    %1131 = vmatpush1.msra.mxu0 0.0
    %1132 = vmatprep.subr.mxu0 0.0
    %1133 = vmatpush1.msra.mxu0 0.0
    %1134 = vmatprep.mubr.f32.mxu0 0.0
    %1135 = vmatmul.mubr.f32.gmra.mrb[0].mxu0 %v477
    %v1136 = vpop.f32.mrb[0].mxu0
    %v1137 = vadd.f32 0.0, %v1136
    %v1138 = vpop.f32.mrb[0].mxu0
    %1139 = vmatprep.mubr.f32.mxu0 0.0
    %1140 = vmatmul.mubr.f32.gmra.mrb[0].mxu0 %v480
    %v1141 = vpop.f32.mrb[0].mxu0
    %v1142 = vadd.f32 0.0, %v1141
    %v1143 = vpop.f32.mrb[0].mxu0
    %1144 = vmatprep.mubr.f32.mxu0 0.0
    %1145 = vmatmul.mubr.f32.gmra.mrb[0].mxu0 %v483
    %v1146 = vpop.f32.mrb[0].mxu0
    %v1147 = vadd.f32 0.0, %v1146
    %v1148 = vpop.f32.mrb[0].mxu0
    %1149 = vmatprep.mubr.f32.mxu0 0.0
    %1150 = vmatmul.mubr.f32.gmra.mrb[0].mxu0 %v486
    %v1151 = vpop.f32.mrb[0].mxu0
    %v1152 = vadd.f32 0.0, %v1151
    %v1153 = vpop.f32.mrb[0].mxu0
    %1154 = vdwg.mxu0
    %v1155 = vadd.f32 %v962, %v1137
    %v1156 = vadd.f32 %v967, %v1142
    %v1157 = vadd.f32 %v972, %v1147
    %v1158 = vadd.f32 %v977, %v1152
    %v1159 = vld [vmem:[%s10] sm:$0x1]
    %v1161 = vlaneseq
    %v1162 = vshrl.u32 %v1161, 7
    %v1163 = vsub.s32 0, %v1162
    %v1164 = vrot.slane %v1159, %v1163
    %v1166 = vadd.f32 %v1155, %v1164
    %v1167 = vadd.f32 %v1156, %v1164
    %v1168 = vadd.f32 %v1157, %v1164
    %v1169 = vadd.f32 %v1158, %v1164
    %v1170 = vmax.f32 %v1166, 0.0
    %v1171 = vmax.f32 %v1167, 0.0
    %v1172 = vmax.f32 %v1168, 0.0
    %v1173 = vmax.f32 %v1169, 0.0
    %v1174 = vld [vmem:[%s11] sm:$0xff]
    %v1175 = vld [vmem:[%s11 + $0x8] sm:$0xff]
    %v1176 = vld [vmem:[%s11 + $0x10] sm:$0xff]
    %v1177 = vld [vmem:[%s11 + $0x18] sm:$0xff]
    %v1178 = vld [vmem:[%s12] sm:$0x1]
    %v1180 = vlaneseq
    %v1181 = vshrl.u32 %v1180, 7
    %v1182 = vsub.s32 0, %v1181
    %v1183 = vrot.slane %v1178, %v1182
    %v1186 = vsel %vm284, %v1170, 0
    %v1189 = vsel %vm284, %v1171, 0
    %v1192 = vsel %vm284, %v1172, 0
    %v1195 = vsel %vm284, %v1173, 0
    %1197 = vmatprep.subr.mxu0 0.0
    %1198 = vmatpush1.msra.mxu0 %v1174
    %1199 = vmatprep.subr.mxu0 0.0
    %1200 = vmatpush1.msra.mxu0 %v1175
    %1201 = vmatprep.subr.mxu0 0.0
    %1202 = vmatpush1.msra.mxu0 %v1176
    %1203 = vmatprep.subr.mxu0 0.0
    %1204 = vmatpush1.msra.mxu0 %v1177
    %1205 = vmatprep.subr.mxu0 0.0
    %1206 = vmatpush1.msra.mxu0 0.0
    %1207 = vmatprep.subr.mxu0 0.0
    %1208 = vmatpush1.msra.mxu0 0.0
    %1209 = vmatprep.subr.mxu0 0.0
    %1210 = vmatpush1.msra.mxu0 0.0
    %1211 = vmatprep.subr.mxu0 0.0
    %1212 = vmatpush1.msra.mxu0 0.0
    %1213 = vmatprep.subr.mxu0 0.0
    %1214 = vmatpush1.msra.mxu0 0.0
    %1215 = vmatprep.subr.mxu0 0.0
    %1216 = vmatpush1.msra.mxu0 0.0
    %1217 = vmatprep.subr.mxu0 0.0
    %1218 = vmatpush1.msra.mxu0 0.0
    %1219 = vmatprep.subr.mxu0 0.0
    %1220 = vmatpush1.msra.mxu0 0.0
    %1221 = vmatprep.subr.mxu0 0.0
    %1222 = vmatpush1.msra.mxu0 0.0
    %1223 = vmatprep.subr.mxu0 0.0
    %1224 = vmatpush1.msra.mxu0 0.0
    %1225 = vmatprep.subr.mxu0 0.0
    %1226 = vmatpush1.msra.mxu0 0.0
    %1227 = vmatprep.subr.mxu0 0.0
    %1228 = vmatpush1.msra.mxu0 0.0
    %1229 = vmatprep.subr.mxu0 0.0
    %1230 = vmatpush1.msra.mxu0 0.0
    %1231 = vmatprep.subr.mxu0 0.0
    %1232 = vmatpush1.msra.mxu0 0.0
    %1233 = vmatprep.subr.mxu0 0.0
    %1234 = vmatpush1.msra.mxu0 0.0
    %1235 = vmatprep.subr.mxu0 0.0
    %1236 = vmatpush1.msra.mxu0 0.0
    %1237 = vmatprep.subr.mxu0 0.0
    %1238 = vmatpush1.msra.mxu0 0.0
    %1239 = vmatprep.subr.mxu0 0.0
    %1240 = vmatpush1.msra.mxu0 0.0
    %1241 = vmatprep.subr.mxu0 0.0
    %1242 = vmatpush1.msra.mxu0 0.0
    %1243 = vmatprep.subr.mxu0 0.0
    %1244 = vmatpush1.msra.mxu0 0.0
    %1245 = vmatprep.subr.mxu0 0.0
    %1246 = vmatpush1.msra.mxu0 0.0
    %1247 = vmatprep.subr.mxu0 0.0
    %1248 = vmatpush1.msra.mxu0 0.0
    %1249 = vmatprep.subr.mxu0 0.0
    %1250 = vmatpush1.msra.mxu0 0.0
    %1251 = vmatprep.subr.mxu0 0.0
    %1252 = vmatpush1.msra.mxu0 0.0
    %1253 = vmatprep.subr.mxu0 0.0
    %1254 = vmatpush1.msra.mxu0 0.0
    %1255 = vmatprep.subr.mxu0 0.0
    %1256 = vmatpush1.msra.mxu0 0.0
    %1257 = vmatprep.subr.mxu0 0.0
    %1258 = vmatpush1.msra.mxu0 0.0
    %1259 = vmatprep.subr.mxu0 0.0
    %1260 = vmatpush1.msra.mxu0 0.0
    %1261 = vmatprep.mubr.f32.mxu0 0.0
    %1262 = vmatmul.mubr.f32.gmra.mrb[0].mxu0 %v1186
    %v1263 = vpop.f32.mrb[0].mxu0
    %v1264 = vadd.f32 %v1183, %v1263
    %v1265 = vpop.f32.mrb[0].mxu0
    %1266 = vmatprep.mubr.f32.mxu0 0.0
    %1267 = vmatmul.mubr.f32.gmra.mrb[0].mxu0 %v1189
    %v1268 = vpop.f32.mrb[0].mxu0
    %v1269 = vadd.f32 %v1183, %v1268
    %v1270 = vpop.f32.mrb[0].mxu0
    %1271 = vmatprep.mubr.f32.mxu0 0.0
    %1272 = vmatmul.mubr.f32.gmra.mrb[0].mxu0 %v1192
    %v1273 = vpop.f32.mrb[0].mxu0
    %v1274 = vadd.f32 %v1183, %v1273
    %v1275 = vpop.f32.mrb[0].mxu0
    %1276 = vmatprep.mubr.f32.mxu0 0.0
    %1277 = vmatmul.mubr.f32.gmra.mrb[0].mxu0 %v1195
    %v1278 = vpop.f32.mrb[0].mxu0
    %v1279 = vadd.f32 %v1183, %v1278
    %v1280 = vpop.f32.mrb[0].mxu0
    %1281 = vdwg.mxu0
    %1282 = vmatprep.subr.mxu0 0.0
    %1283 = vmatpush1.xpose.msra.mxu0 %v604
    %1284 = vmatprep.subr.mxu0 0.0
    %1285 = vmatpush1.xpose.msra.mxu0 %v607
    %1286 = vmatprep.subr.mxu0 0.0
    %1287 = vmatpush1.xpose.msra.mxu0 %v610
    %1288 = vmatprep.subr.mxu0 0.0
    %1289 = vmatpush1.xpose.msra.mxu0 %v613
    %1290 = vmatprep.subr.mxu0 0.0
    %1291 = vmatpush1.xpose.msra.mxu0 0.0
    %1292 = vmatprep.subr.mxu0 0.0
    %1293 = vmatpush1.xpose.msra.mxu0 0.0
    %1294 = vmatprep.subr.mxu0 0.0
    %1295 = vmatpush1.xpose.msra.mxu0 0.0
    %1296 = vmatprep.subr.mxu0 0.0
    %1297 = vmatpush1.xpose.msra.mxu0 0.0
    %1298 = vmatprep.subr.mxu0 0.0
    %1299 = vmatpush1.xpose.msra.mxu0 0.0
    %1300 = vmatprep.subr.mxu0 0.0
    %1301 = vmatpush1.xpose.msra.mxu0 0.0
    %1302 = vmatprep.subr.mxu0 0.0
    %1303 = vmatpush1.xpose.msra.mxu0 0.0
    %1304 = vmatprep.subr.mxu0 0.0
    %1305 = vmatpush1.xpose.msra.mxu0 0.0
    %1306 = vmatprep.subr.mxu0 0.0
    %1307 = vmatpush1.xpose.msra.mxu0 0.0
    %1308 = vmatprep.subr.mxu0 0.0
    %1309 = vmatpush1.xpose.msra.mxu0 0.0
    %1310 = vmatprep.subr.mxu0 0.0
    %1311 = vmatpush1.xpose.msra.mxu0 0.0
    %1312 = vmatprep.subr.mxu0 0.0
    %1313 = vmatpush1.xpose.msra.mxu0 0.0
    %1314 = vmatprep.subr.mxu0 0.0
    %1315 = vmatpush1.xpose.msra.mxu0 0.0
    %1316 = vmatprep.subr.mxu0 0.0
    %1317 = vmatpush1.xpose.msra.mxu0 0.0
    %1318 = vmatprep.subr.mxu0 0.0
    %1319 = vmatpush1.xpose.msra.mxu0 0.0
    %1320 = vmatprep.subr.mxu0 0.0
    %1321 = vmatpush1.xpose.msra.mxu0 0.0
    %1322 = vmatprep.subr.mxu0 0.0
    %1323 = vmatpush1.xpose.msra.mxu0 0.0
    %1324 = vmatprep.subr.mxu0 0.0
    %1325 = vmatpush1.xpose.msra.mxu0 0.0
    %1326 = vmatprep.subr.mxu0 0.0
    %1327 = vmatpush1.xpose.msra.mxu0 0.0
    %1328 = vmatprep.subr.mxu0 0.0
    %1329 = vmatpush1.xpose.msra.mxu0 0.0
    %1330 = vmatprep.subr.mxu0 0.0
    %1331 = vmatpush1.xpose.msra.mxu0 0.0
    %1332 = vmatprep.subr.mxu0 0.0
    %1333 = vmatpush1.xpose.msra.mxu0 0.0
    %1334 = vmatprep.subr.mxu0 0.0
    %1335 = vmatpush1.xpose.msra.mxu0 0.0
    %1336 = vmatprep.subr.mxu0 0.0
    %1337 = vmatpush1.xpose.msra.mxu0 0.0
    %1338 = vmatprep.subr.mxu0 0.0
    %1339 = vmatpush1.xpose.msra.mxu0 0.0
    %1340 = vmatprep.subr.mxu0 0.0
    %1341 = vmatpush1.xpose.msra.mxu0 0.0
    %1342 = vmatprep.subr.mxu0 0.0
    %1343 = vmatpush1.xpose.msra.mxu0 0.0
    %1344 = vmatprep.subr.mxu0 0.0
    %1345 = vmatpush1.xpose.msra.mxu0 0.0
    %1346 = vmatprep.mubr.f32.mxu0 0.0
    %1347 = vmatmul.mubr.f32.gmra.mrb[0].mxu0 %v604
    %v1348 = vpop.f32.mrb[0].mxu0
    %v1349 = vadd.f32 0.0, %v1348
    %v1350 = vpop.f32.mrb[0].mxu0
    %1351 = vmatprep.mubr.f32.mxu0 0.0
    %1352 = vmatmul.mubr.f32.gmra.mrb[0].mxu0 %v607
    %v1353 = vpop.f32.mrb[0].mxu0
    %v1354 = vadd.f32 0.0, %v1353
    %v1355 = vpop.f32.mrb[0].mxu0
    %1356 = vmatprep.mubr.f32.mxu0 0.0
    %1357 = vmatmul.mubr.f32.gmra.mrb[0].mxu0 %v610
    %v1358 = vpop.f32.mrb[0].mxu0
    %v1359 = vadd.f32 0.0, %v1358
    %v1360 = vpop.f32.mrb[0].mxu0
    %1361 = vmatprep.mubr.f32.mxu0 0.0
    %1362 = vmatmul.mubr.f32.gmra.mrb[0].mxu0 %v613
    %v1363 = vpop.f32.mrb[0].mxu0
    %v1364 = vadd.f32 0.0, %v1363
    %v1365 = vpop.f32.mrb[0].mxu0
    %1366 = vdwg.mxu0
    %v1367 = vlaneseq
    %v1368 = vshrl.u32 %v1367, 7
    %v1369 = vadd.s32 %v1368, 8
    %v1370 = vadd.s32 %v1368, 16
    %v1371 = vadd.s32 %v1368, 24
    %v1372 = vlaneseq
    %v1373 = vand.u32 %v1372, 127
    %vm1374 = vcmp.eq.s32.totalorder %v1368, %v1373
    %vm1375 = vcmp.eq.s32.totalorder %v1369, %v1373
    %vm1376 = vcmp.eq.s32.totalorder %v1370, %v1373
    %vm1377 = vcmp.eq.s32.totalorder %v1371, %v1373
    %v1378 = vsel %vm1374, 1, 0
    %v1379 = vsel %vm1375, 1, 0
    %v1380 = vsel %vm1376, 1, 0
    %v1381 = vsel %vm1377, 1, 0
    %v1382 = vcvt.s32.f32 %v1378
    %v1383 = vcvt.s32.f32 %v1379
    %v1384 = vcvt.s32.f32 %v1380
    %v1385 = vcvt.s32.f32 %v1381
    %v1386 = vmul.f32 %v1349, %v1382
    %v1387 = vmul.f32 %v1354, %v1383
    %v1388 = vmul.f32 %v1359, %v1384
    %v1389 = vmul.f32 %v1364, %v1385
    %v1390 = vsel %vm284, %v1386, 0.0
    %v1391 = vsel %vm284, %v1387, 0.0
    %v1392 = vadd.f32 %v1390, %v1391
    %v1393 = vsel %vm284, %v1388, 0.0
    %v1394 = vadd.f32 %v1392, %v1393
    %v1395 = vsel %vm284, %v1389, 0.0
    %v1396 = vadd.f32 %v1394, %v1395
    %v1397 = vrot.slane %v1396, 4
    %v1398 = vadd.f32 %v1396, %v1397
    %v1399 = vrot.slane %v1398, 2
    %v1400 = vadd.f32 %v1398, %v1399
    %v1401 = vrot.slane %v1400, 1
    %v1402 = vadd.f32 %v1400, %v1401
    %v1403 = vmul.f32 %v1349, 2.0
    %v1404 = vmul.f32 %v1354, 2.0
    %v1405 = vmul.f32 %v1359, 2.0
    %v1406 = vmul.f32 %v1364, 2.0
    %v1407 = vsub.f32 %v1403, %v1402
    %v1408 = vsub.f32 %v1404, %v1402
    %v1409 = vsub.f32 %v1405, %v1402
    %v1410 = vsub.f32 %v1406, %v1402
    %v1411 = vld [vmem:[%s3] sm:$0xff]
    %v1412 = vld [vmem:[%s3 + $0x8] sm:$0xff]
    %v1413 = vld [vmem:[%s3 + $0x10] sm:$0xff]
    %v1414 = vld [vmem:[%s3 + $0x18] sm:$0xff]
    %vm1415 = vcmp.gt.f32.partialorder %v1411, 0.5
    %vm1416 = vcmp.gt.f32.partialorder %v1412, 0.5
    %vm1417 = vcmp.gt.f32.partialorder %v1413, 0.5
    %vm1418 = vcmp.gt.f32.partialorder %v1414, 0.5
    %v1419 = vsel %vm1415, %v1407, -1e+30
    %v1420 = vsel %vm1416, %v1408, -1e+30
    %v1421 = vsel %vm1417, %v1409, -1e+30
    %v1422 = vsel %vm1418, %v1410, -1e+30
    %v1423 = vld [vmem:[%s14] sm:$0xff]
    %v1424 = vld [vmem:[%s14 + $0x8] sm:$0xff]
    %v1425 = vld [vmem:[%s14 + $0x10] sm:$0xff]
    %v1426 = vld [vmem:[%s14 + $0x18] sm:$0xff]
    %v1427 = vld [vmem:[%s15] sm:$0x1]
    %v1429 = vlaneseq
    %v1430 = vshrl.u32 %v1429, 7
    %v1431 = vsub.s32 0, %v1430
    %v1432 = vrot.slane %v1427, %v1431
    %1434 = vmatprep.subr.mxu0 0.0
    %1435 = vmatpush1.msra.mxu0 %v1423
    %1436 = vmatprep.subr.mxu0 0.0
    %1437 = vmatpush1.msra.mxu0 %v1424
    %1438 = vmatprep.subr.mxu0 0.0
    %1439 = vmatpush1.msra.mxu0 %v1425
    %1440 = vmatprep.subr.mxu0 0.0
    %1441 = vmatpush1.msra.mxu0 %v1426
    %1442 = vmatprep.subr.mxu0 0.0
    %1443 = vmatpush1.msra.mxu0 0.0
    %1444 = vmatprep.subr.mxu0 0.0
    %1445 = vmatpush1.msra.mxu0 0.0
    %1446 = vmatprep.subr.mxu0 0.0
    %1447 = vmatpush1.msra.mxu0 0.0
    %1448 = vmatprep.subr.mxu0 0.0
    %1449 = vmatpush1.msra.mxu0 0.0
    %1450 = vmatprep.subr.mxu0 0.0
    %1451 = vmatpush1.msra.mxu0 0.0
    %1452 = vmatprep.subr.mxu0 0.0
    %1453 = vmatpush1.msra.mxu0 0.0
    %1454 = vmatprep.subr.mxu0 0.0
    %1455 = vmatpush1.msra.mxu0 0.0
    %1456 = vmatprep.subr.mxu0 0.0
    %1457 = vmatpush1.msra.mxu0 0.0
    %1458 = vmatprep.subr.mxu0 0.0
    %1459 = vmatpush1.msra.mxu0 0.0
    %1460 = vmatprep.subr.mxu0 0.0
    %1461 = vmatpush1.msra.mxu0 0.0
    %1462 = vmatprep.subr.mxu0 0.0
    %1463 = vmatpush1.msra.mxu0 0.0
    %1464 = vmatprep.subr.mxu0 0.0
    %1465 = vmatpush1.msra.mxu0 0.0
    %1466 = vmatprep.subr.mxu0 0.0
    %1467 = vmatpush1.msra.mxu0 0.0
    %1468 = vmatprep.subr.mxu0 0.0
    %1469 = vmatpush1.msra.mxu0 0.0
    %1470 = vmatprep.subr.mxu0 0.0
    %1471 = vmatpush1.msra.mxu0 0.0
    %1472 = vmatprep.subr.mxu0 0.0
    %1473 = vmatpush1.msra.mxu0 0.0
    %1474 = vmatprep.subr.mxu0 0.0
    %1475 = vmatpush1.msra.mxu0 0.0
    %1476 = vmatprep.subr.mxu0 0.0
    %1477 = vmatpush1.msra.mxu0 0.0
    %1478 = vmatprep.subr.mxu0 0.0
    %1479 = vmatpush1.msra.mxu0 0.0
    %1480 = vmatprep.subr.mxu0 0.0
    %1481 = vmatpush1.msra.mxu0 0.0
    %1482 = vmatprep.subr.mxu0 0.0
    %1483 = vmatpush1.msra.mxu0 0.0
    %1484 = vmatprep.subr.mxu0 0.0
    %1485 = vmatpush1.msra.mxu0 0.0
    %1486 = vmatprep.subr.mxu0 0.0
    %1487 = vmatpush1.msra.mxu0 0.0
    %1488 = vmatprep.subr.mxu0 0.0
    %1489 = vmatpush1.msra.mxu0 0.0
    %1490 = vmatprep.subr.mxu0 0.0
    %1491 = vmatpush1.msra.mxu0 0.0
    %1492 = vmatprep.subr.mxu0 0.0
    %1493 = vmatpush1.msra.mxu0 0.0
    %1494 = vmatprep.subr.mxu0 0.0
    %1495 = vmatpush1.msra.mxu0 0.0
    %1496 = vmatprep.subr.mxu0 0.0
    %1497 = vmatpush1.msra.mxu0 0.0
    %1498 = vmatprep.mubr.f32.mxu0 0.0
    %1499 = vmatmul.mubr.f32.gmra.mrb[0].mxu0 %v604
    %v1500 = vpop.f32.mrb[0].mxu0
    %v1501 = vadd.f32 %v1432, %v1500
    %v1502 = vpop.f32.mrb[0].mxu0
    %1503 = vmatprep.mubr.f32.mxu0 0.0
    %1504 = vmatmul.mubr.f32.gmra.mrb[0].mxu0 %v607
    %v1505 = vpop.f32.mrb[0].mxu0
    %v1506 = vadd.f32 %v1432, %v1505
    %v1507 = vpop.f32.mrb[0].mxu0
    %1508 = vmatprep.mubr.f32.mxu0 0.0
    %1509 = vmatmul.mubr.f32.gmra.mrb[0].mxu0 %v610
    %v1510 = vpop.f32.mrb[0].mxu0
    %v1511 = vadd.f32 %v1432, %v1510
    %v1512 = vpop.f32.mrb[0].mxu0
    %1513 = vmatprep.mubr.f32.mxu0 0.0
    %1514 = vmatmul.mubr.f32.gmra.mrb[0].mxu0 %v613
    %v1515 = vpop.f32.mrb[0].mxu0
    %v1516 = vadd.f32 %v1432, %v1515
    %v1517 = vpop.f32.mrb[0].mxu0
    %1518 = vdwg.mxu0
    %v1519 = vcvt.s32.f32 %v1373
    %v1520 = vsel %vm284, %v1419, -inf
    %1521 = vmax.xlane.f32.xlu0 %v1520
    %v1522 = vpop.xlane.xlu0 %1521
    %v1523 = vsel %vm284, %v1420, -inf
    %1524 = vmax.xlane.f32.xlu0 %v1523
    %v1525 = vpop.xlane.xlu0 %1524
    %v1526 = vsel %vm284, %v1421, -inf
    %1527 = vmax.xlane.f32.xlu0 %v1526
    %v1528 = vpop.xlane.xlu0 %1527
    %v1529 = vsel %vm284, %v1422, -inf
    %1530 = vmax.xlane.f32.xlu0 %v1529
    %v1531 = vpop.xlane.xlu0 %1530
    %vm1532 = vcmp.ge.f32.partialorder %v1419, %v1522
    %vm1533 = vcmp.ge.f32.partialorder %v1420, %v1525
    %vm1534 = vcmp.ge.f32.partialorder %v1421, %v1528
    %vm1535 = vcmp.ge.f32.partialorder %v1422, %v1531
    %v1536 = vsel %vm1532, %v1519, 32.0
    %v1537 = vsel %vm1533, %v1519, 32.0
    %v1538 = vsel %vm1534, %v1519, 32.0
    %v1539 = vsel %vm1535, %v1519, 32.0
    %v1540 = vsel %vm284, %v1536, inf
    %1541 = vmin.xlane.f32.xlu0 %v1540
    %v1542 = vpop.xlane.xlu0 %1541
    %v1543 = vsel %vm284, %v1537, inf
    %1544 = vmin.xlane.f32.xlu0 %v1543
    %v1545 = vpop.xlane.xlu0 %1544
    %v1546 = vsel %vm284, %v1538, inf
    %1547 = vmin.xlane.f32.xlu0 %v1546
    %v1548 = vpop.xlane.xlu0 %1547
    %v1549 = vsel %vm284, %v1539, inf
    %1550 = vmin.xlane.f32.xlu0 %v1549
    %v1551 = vpop.xlane.xlu0 %1550
    %vm1552 = vcmp.eq.f32.partialorder %v1519, %v1542
    %vm1553 = vcmp.eq.f32.partialorder %v1519, %v1545
    %vm1554 = vcmp.eq.f32.partialorder %v1519, %v1548
    %vm1555 = vcmp.eq.f32.partialorder %v1519, %v1551
    %v1556 = vsel %vm1552, 1, 0
    %v1557 = vsel %vm1553, 1, 0
    %v1558 = vsel %vm1554, 1, 0
    %v1559 = vsel %vm1555, 1, 0
    %v1560 = vcvt.s32.f32 %v1556
    %v1561 = vcvt.s32.f32 %v1557
    %v1562 = vcvt.s32.f32 %v1558
    %v1563 = vcvt.s32.f32 %v1559
    %vm1564 = vcmp.gt.f32.partialorder %v1560, 0.5
    %vm1565 = vcmp.gt.f32.partialorder %v1561, 0.5
    %vm1566 = vcmp.gt.f32.partialorder %v1562, 0.5
    %vm1567 = vcmp.gt.f32.partialorder %v1563, 0.5
    %v1568 = vsel %vm1564, -1e+30, %v1419
    %v1569 = vsel %vm1565, -1e+30, %v1420
    %v1570 = vsel %vm1566, -1e+30, %v1421
    %v1571 = vsel %vm1567, -1e+30, %v1422
    %1572 = vst.msk [vmem:[#allocation2] sm:$0xff] %vm284, %v1560
    %1573 = vst.msk [vmem:[#allocation2 + $0x8] sm:$0xff] %vm284, %v1561
    %1574 = vst.msk [vmem:[#allocation2 + $0x10] sm:$0xff] %vm284, %v1562
    %1575 = vst.msk [vmem:[#allocation2 + $0x18] sm:$0xff] %vm284, %v1563
    %1576 = vst.msk [vmem:[#allocation3] sm:$0xff] %vm284, %v1501
    %1577 = vst.msk [vmem:[#allocation3 + $0x8] sm:$0xff] %vm284, %v1506
    %1578 = vst.msk [vmem:[#allocation3 + $0x10] sm:$0xff] %vm284, %v1511
    %1579 = vst.msk [vmem:[#allocation3 + $0x18] sm:$0xff] %vm284, %v1516
    %v1580 = vsel %vm284, %v1568, -inf
    %1581 = vmax.xlane.f32.xlu0 %v1580
    %v1582 = vpop.xlane.xlu0 %1581
    %v1583 = vsel %vm284, %v1569, -inf
    %1584 = vmax.xlane.f32.xlu0 %v1583
    %v1585 = vpop.xlane.xlu0 %1584
    %v1586 = vsel %vm284, %v1570, -inf
    %1587 = vmax.xlane.f32.xlu0 %v1586
    %v1588 = vpop.xlane.xlu0 %1587
    %v1589 = vsel %vm284, %v1571, -inf
    %1590 = vmax.xlane.f32.xlu0 %v1589
    %v1591 = vpop.xlane.xlu0 %1590
    %vm1592 = vcmp.ge.f32.partialorder %v1568, %v1582
    %vm1593 = vcmp.ge.f32.partialorder %v1569, %v1585
    %vm1594 = vcmp.ge.f32.partialorder %v1570, %v1588
    %vm1595 = vcmp.ge.f32.partialorder %v1571, %v1591
    %v1596 = vsel %vm1592, %v1519, 32.0
    %v1597 = vsel %vm1593, %v1519, 32.0
    %v1598 = vsel %vm1594, %v1519, 32.0
    %v1599 = vsel %vm1595, %v1519, 32.0
    %v1600 = vsel %vm284, %v1596, inf
    %1601 = vmin.xlane.f32.xlu0 %v1600
    %v1602 = vpop.xlane.xlu0 %1601
    %v1603 = vsel %vm284, %v1597, inf
    %1604 = vmin.xlane.f32.xlu0 %v1603
    %v1605 = vpop.xlane.xlu0 %1604
    %v1606 = vsel %vm284, %v1598, inf
    %1607 = vmin.xlane.f32.xlu0 %v1606
    %v1608 = vpop.xlane.xlu0 %1607
    %v1609 = vsel %vm284, %v1599, inf
    %1610 = vmin.xlane.f32.xlu0 %v1609
    %v1611 = vpop.xlane.xlu0 %1610
    %vm1612 = vcmp.eq.f32.partialorder %v1519, %v1602
    %vm1613 = vcmp.eq.f32.partialorder %v1519, %v1605
    %vm1614 = vcmp.eq.f32.partialorder %v1519, %v1608
    %vm1615 = vcmp.eq.f32.partialorder %v1519, %v1611
    %v1616 = vsel %vm1612, 1, 0
    %v1617 = vsel %vm1613, 1, 0
    %v1618 = vsel %vm1614, 1, 0
    %v1619 = vsel %vm1615, 1, 0
    %v1620 = vcvt.s32.f32 %v1616
    %v1621 = vcvt.s32.f32 %v1617
    %v1622 = vcvt.s32.f32 %v1618
    %v1623 = vcvt.s32.f32 %v1619
    %vm1624 = vcmp.gt.f32.partialorder %v1620, 0.5
    %vm1625 = vcmp.gt.f32.partialorder %v1621, 0.5
    %vm1626 = vcmp.gt.f32.partialorder %v1622, 0.5
    %vm1627 = vcmp.gt.f32.partialorder %v1623, 0.5
    %v1628 = vsel %vm1624, -1e+30, %v1568
    %v1629 = vsel %vm1625, -1e+30, %v1569
    %v1630 = vsel %vm1626, -1e+30, %v1570
    %v1631 = vsel %vm1627, -1e+30, %v1571
    %1632 = vst.msk [vmem:[#allocation2 + $0x20] sm:$0xff] %vm284, %v1620
    %1633 = vst.msk [vmem:[#allocation2 + $0x28] sm:$0xff] %vm284, %v1621
    %1634 = vst.msk [vmem:[#allocation2 + $0x30] sm:$0xff] %vm284, %v1622
    %1635 = vst.msk [vmem:[#allocation2 + $0x38] sm:$0xff] %vm284, %v1623
    %1636 = vst.msk [vmem:[#allocation3 + $0x20] sm:$0xff] %vm284, %v1501
    %1637 = vst.msk [vmem:[#allocation3 + $0x28] sm:$0xff] %vm284, %v1506
    %1638 = vst.msk [vmem:[#allocation3 + $0x30] sm:$0xff] %vm284, %v1511
    %1639 = vst.msk [vmem:[#allocation3 + $0x38] sm:$0xff] %vm284, %v1516
    %v1640 = vsel %vm284, %v1628, -inf
    %1641 = vmax.xlane.f32.xlu0 %v1640
    %v1642 = vpop.xlane.xlu0 %1641
    %v1643 = vsel %vm284, %v1629, -inf
    %1644 = vmax.xlane.f32.xlu0 %v1643
    %v1645 = vpop.xlane.xlu0 %1644
    %v1646 = vsel %vm284, %v1630, -inf
    %1647 = vmax.xlane.f32.xlu0 %v1646
    %v1648 = vpop.xlane.xlu0 %1647
    %v1649 = vsel %vm284, %v1631, -inf
    %1650 = vmax.xlane.f32.xlu0 %v1649
    %v1651 = vpop.xlane.xlu0 %1650
    %vm1652 = vcmp.ge.f32.partialorder %v1628, %v1642
    %vm1653 = vcmp.ge.f32.partialorder %v1629, %v1645
    %vm1654 = vcmp.ge.f32.partialorder %v1630, %v1648
    %vm1655 = vcmp.ge.f32.partialorder %v1631, %v1651
    %v1656 = vsel %vm1652, %v1519, 32.0
    %v1657 = vsel %vm1653, %v1519, 32.0
    %v1658 = vsel %vm1654, %v1519, 32.0
    %v1659 = vsel %vm1655, %v1519, 32.0
    %v1660 = vsel %vm284, %v1656, inf
    %1661 = vmin.xlane.f32.xlu0 %v1660
    %v1662 = vpop.xlane.xlu0 %1661
    %v1663 = vsel %vm284, %v1657, inf
    %1664 = vmin.xlane.f32.xlu0 %v1663
    %v1665 = vpop.xlane.xlu0 %1664
    %v1666 = vsel %vm284, %v1658, inf
    %1667 = vmin.xlane.f32.xlu0 %v1666
    %v1668 = vpop.xlane.xlu0 %1667
    %v1669 = vsel %vm284, %v1659, inf
    %1670 = vmin.xlane.f32.xlu0 %v1669
    %v1671 = vpop.xlane.xlu0 %1670
    %vm1672 = vcmp.eq.f32.partialorder %v1519, %v1662
    %vm1673 = vcmp.eq.f32.partialorder %v1519, %v1665
    %vm1674 = vcmp.eq.f32.partialorder %v1519, %v1668
    %vm1675 = vcmp.eq.f32.partialorder %v1519, %v1671
    %v1676 = vsel %vm1672, 1, 0
    %v1677 = vsel %vm1673, 1, 0
    %v1678 = vsel %vm1674, 1, 0
    %v1679 = vsel %vm1675, 1, 0
    %v1680 = vcvt.s32.f32 %v1676
    %v1681 = vcvt.s32.f32 %v1677
    %v1682 = vcvt.s32.f32 %v1678
    %v1683 = vcvt.s32.f32 %v1679
    %1684 = vst.msk [vmem:[#allocation2 + $0x40] sm:$0xff] %vm284, %v1680
    %1685 = vst.msk [vmem:[#allocation2 + $0x48] sm:$0xff] %vm284, %v1681
    %1686 = vst.msk [vmem:[#allocation2 + $0x50] sm:$0xff] %vm284, %v1682
    %1687 = vst.msk [vmem:[#allocation2 + $0x58] sm:$0xff] %vm284, %v1683
    %1688 = vst.msk [vmem:[#allocation3 + $0x40] sm:$0xff] %vm284, %v1501
    %1689 = vst.msk [vmem:[#allocation3 + $0x48] sm:$0xff] %vm284, %v1506
    %1690 = vst.msk [vmem:[#allocation3 + $0x50] sm:$0xff] %vm284, %v1511
    %1691 = vst.msk [vmem:[#allocation3 + $0x58] sm:$0xff] %vm284, %v1516
    %v1692 = vld [vmem:[#allocation2] sm:$0xff]
    %v1693 = vld [vmem:[#allocation2 + $0x8] sm:$0xff]
    %v1694 = vld [vmem:[#allocation2 + $0x10] sm:$0xff]
    %v1695 = vld [vmem:[#allocation2 + $0x18] sm:$0xff]
    %v1696 = vld [vmem:[#allocation2 + $0x20] sm:$0xff]
    %v1697 = vld [vmem:[#allocation2 + $0x28] sm:$0xff]
    %v1698 = vld [vmem:[#allocation2 + $0x30] sm:$0xff]
    %v1699 = vld [vmem:[#allocation2 + $0x38] sm:$0xff]
    %v1700 = vld [vmem:[#allocation2 + $0x40] sm:$0xff]
    %v1701 = vld [vmem:[#allocation2 + $0x48] sm:$0xff]
    %v1702 = vld [vmem:[#allocation2 + $0x50] sm:$0xff]
    %v1703 = vld [vmem:[#allocation2 + $0x58] sm:$0xff]
    %v1705 = vsel %vm284, %v1692, 0
    %v1708 = vsel %vm284, %v1693, 0
    %v1711 = vsel %vm284, %v1694, 0
    %v1714 = vsel %vm284, %v1695, 0
    %v1717 = vsel %vm284, %v1696, 0
    %v1720 = vsel %vm284, %v1697, 0
    %v1723 = vsel %vm284, %v1698, 0
    %v1726 = vsel %vm284, %v1699, 0
    %v1729 = vsel %vm284, %v1700, 0
    %v1732 = vsel %vm284, %v1701, 0
    %v1735 = vsel %vm284, %v1702, 0
    %v1738 = vsel %vm284, %v1703, 0
    %1740 = vmatprep.subr.mxu0 0.0
    %1741 = vmatpush1.msra.mxu0 %v588
    %1742 = vmatprep.subr.mxu0 0.0
    %1743 = vmatpush1.msra.mxu0 %v589
    %1744 = vmatprep.subr.mxu0 0.0
    %1745 = vmatpush1.msra.mxu0 %v590
    %1746 = vmatprep.subr.mxu0 0.0
    %1747 = vmatpush1.msra.mxu0 %v591
    %1748 = vmatprep.subr.mxu0 0.0
    %1749 = vmatpush1.msra.mxu0 0.0
    %1750 = vmatprep.subr.mxu0 0.0
    %1751 = vmatpush1.msra.mxu0 0.0
    %1752 = vmatprep.subr.mxu0 0.0
    %1753 = vmatpush1.msra.mxu0 0.0
    %1754 = vmatprep.subr.mxu0 0.0
    %1755 = vmatpush1.msra.mxu0 0.0
    %1756 = vmatprep.subr.mxu0 0.0
    %1757 = vmatpush1.msra.mxu0 0.0
    %1758 = vmatprep.subr.mxu0 0.0
    %1759 = vmatpush1.msra.mxu0 0.0
    %1760 = vmatprep.subr.mxu0 0.0
    %1761 = vmatpush1.msra.mxu0 0.0
    %1762 = vmatprep.subr.mxu0 0.0
    %1763 = vmatpush1.msra.mxu0 0.0
    %1764 = vmatprep.subr.mxu0 0.0
    %1765 = vmatpush1.msra.mxu0 0.0
    %1766 = vmatprep.subr.mxu0 0.0
    %1767 = vmatpush1.msra.mxu0 0.0
    %1768 = vmatprep.subr.mxu0 0.0
    %1769 = vmatpush1.msra.mxu0 0.0
    %1770 = vmatprep.subr.mxu0 0.0
    %1771 = vmatpush1.msra.mxu0 0.0
    %1772 = vmatprep.subr.mxu0 0.0
    %1773 = vmatpush1.msra.mxu0 0.0
    %1774 = vmatprep.subr.mxu0 0.0
    %1775 = vmatpush1.msra.mxu0 0.0
    %1776 = vmatprep.subr.mxu0 0.0
    %1777 = vmatpush1.msra.mxu0 0.0
    %1778 = vmatprep.subr.mxu0 0.0
    %1779 = vmatpush1.msra.mxu0 0.0
    %1780 = vmatprep.subr.mxu0 0.0
    %1781 = vmatpush1.msra.mxu0 0.0
    %1782 = vmatprep.subr.mxu0 0.0
    %1783 = vmatpush1.msra.mxu0 0.0
    %1784 = vmatprep.subr.mxu0 0.0
    %1785 = vmatpush1.msra.mxu0 0.0
    %1786 = vmatprep.subr.mxu0 0.0
    %1787 = vmatpush1.msra.mxu0 0.0
    %1788 = vmatprep.subr.mxu0 0.0
    %1789 = vmatpush1.msra.mxu0 0.0
    %1790 = vmatprep.subr.mxu0 0.0
    %1791 = vmatpush1.msra.mxu0 0.0
    %1792 = vmatprep.subr.mxu0 0.0
    %1793 = vmatpush1.msra.mxu0 0.0
    %1794 = vmatprep.subr.mxu0 0.0
    %1795 = vmatpush1.msra.mxu0 0.0
    %1796 = vmatprep.subr.mxu0 0.0
    %1797 = vmatpush1.msra.mxu0 0.0
    %1798 = vmatprep.subr.mxu0 0.0
    %1799 = vmatpush1.msra.mxu0 0.0
    %1800 = vmatprep.subr.mxu0 0.0
    %1801 = vmatpush1.msra.mxu0 0.0
    %1802 = vmatprep.subr.mxu0 0.0
    %1803 = vmatpush1.msra.mxu0 0.0
    %1804 = vmatprep.mubr.f32.mxu0 0.0
    %1805 = vmatmul.mubr.f32.gmra.mrb[0].mxu0 %v1705
    %v1806 = vpop.f32.mrb[0].mxu0
    %v1807 = vadd.f32 0.0, %v1806
    %v1808 = vpop.f32.mrb[0].mxu0
    %1809 = vmatprep.mubr.f32.mxu0 0.0
    %1810 = vmatmul.mubr.f32.gmra.mrb[0].mxu0 %v1708
    %v1811 = vpop.f32.mrb[0].mxu0
    %v1812 = vadd.f32 0.0, %v1811
    %v1813 = vpop.f32.mrb[0].mxu0
    %1814 = vmatprep.mubr.f32.mxu0 0.0
    %1815 = vmatmul.mubr.f32.gmra.mrb[0].mxu0 %v1711
    %v1816 = vpop.f32.mrb[0].mxu0
    %v1817 = vadd.f32 0.0, %v1816
    %v1818 = vpop.f32.mrb[0].mxu0
    %1819 = vmatprep.mubr.f32.mxu0 0.0
    %1820 = vmatmul.mubr.f32.gmra.mrb[0].mxu0 %v1714
    %v1821 = vpop.f32.mrb[0].mxu0
    %v1822 = vadd.f32 0.0, %v1821
    %v1823 = vpop.f32.mrb[0].mxu0
    %1824 = vmatprep.mubr.f32.mxu0 0.0
    %1825 = vmatmul.mubr.f32.gmra.mrb[0].mxu0 %v1717
    %v1826 = vpop.f32.mrb[0].mxu0
    %v1827 = vadd.f32 0.0, %v1826
    %v1828 = vpop.f32.mrb[0].mxu0
    %1829 = vmatprep.mubr.f32.mxu0 0.0
    %1830 = vmatmul.mubr.f32.gmra.mrb[0].mxu0 %v1720
    %v1831 = vpop.f32.mrb[0].mxu0
    %v1832 = vadd.f32 0.0, %v1831
    %v1833 = vpop.f32.mrb[0].mxu0
    %1834 = vmatprep.mubr.f32.mxu0 0.0
    %1835 = vmatmul.mubr.f32.gmra.mrb[0].mxu0 %v1723
    %v1836 = vpop.f32.mrb[0].mxu0
    %v1837 = vadd.f32 0.0, %v1836
    %v1838 = vpop.f32.mrb[0].mxu0
    %1839 = vmatprep.mubr.f32.mxu0 0.0
    %1840 = vmatmul.mubr.f32.gmra.mrb[0].mxu0 %v1726
    %v1841 = vpop.f32.mrb[0].mxu0
    %v1842 = vadd.f32 0.0, %v1841
    %v1843 = vpop.f32.mrb[0].mxu0
    %1844 = vmatprep.mubr.f32.mxu0 0.0
    %1845 = vmatmul.mubr.f32.gmra.mrb[0].mxu0 %v1729
    %v1846 = vpop.f32.mrb[0].mxu0
    %v1847 = vadd.f32 0.0, %v1846
    %v1848 = vpop.f32.mrb[0].mxu0
    %1849 = vmatprep.mubr.f32.mxu0 0.0
    %1850 = vmatmul.mubr.f32.gmra.mrb[0].mxu0 %v1732
    %v1851 = vpop.f32.mrb[0].mxu0
    %v1852 = vadd.f32 0.0, %v1851
    %v1853 = vpop.f32.mrb[0].mxu0
    %1854 = vmatprep.mubr.f32.mxu0 0.0
    %1855 = vmatmul.mubr.f32.gmra.mrb[0].mxu0 %v1735
    %v1856 = vpop.f32.mrb[0].mxu0
    %v1857 = vadd.f32 0.0, %v1856
    %v1858 = vpop.f32.mrb[0].mxu0
    %1859 = vmatprep.mubr.f32.mxu0 0.0
    %1860 = vmatmul.mubr.f32.gmra.mrb[0].mxu0 %v1738
    %v1861 = vpop.f32.mrb[0].mxu0
    %v1862 = vadd.f32 0.0, %v1861
    %v1863 = vpop.f32.mrb[0].mxu0
    %1864 = vdwg.mxu0
    %v1865 = vld [vmem:[%s13] sm:$0xff]
    %v1866 = vld [vmem:[%s13 + $0x8] sm:$0xff]
    %v1867 = vld [vmem:[%s13 + $0x10] sm:$0xff]
    %v1868 = vld [vmem:[%s13 + $0x18] sm:$0xff]
    %v1869 = vld [vmem:[#allocation3] sm:$0xff]
    %v1870 = vld [vmem:[#allocation3 + $0x8] sm:$0xff]
    %v1871 = vld [vmem:[#allocation3 + $0x10] sm:$0xff]
    %v1872 = vld [vmem:[#allocation3 + $0x18] sm:$0xff]
    %v1873 = vld [vmem:[#allocation3 + $0x20] sm:$0xff]
    %v1874 = vld [vmem:[#allocation3 + $0x28] sm:$0xff]
    %v1875 = vld [vmem:[#allocation3 + $0x30] sm:$0xff]
    %v1876 = vld [vmem:[#allocation3 + $0x38] sm:$0xff]
    %v1877 = vld [vmem:[#allocation3 + $0x40] sm:$0xff]
    %v1878 = vld [vmem:[#allocation3 + $0x48] sm:$0xff]
    %v1879 = vld [vmem:[#allocation3 + $0x50] sm:$0xff]
    %v1880 = vld [vmem:[#allocation3 + $0x58] sm:$0xff]
    %v1882 = vsel %vm284, %v1807, 0
    %v1885 = vsel %vm284, %v1812, 0
    %v1888 = vsel %vm284, %v1817, 0
    %v1891 = vsel %vm284, %v1822, 0
    %v1894 = vsel %vm284, %v1827, 0
    %v1897 = vsel %vm284, %v1832, 0
    %v1900 = vsel %vm284, %v1837, 0
    %v1903 = vsel %vm284, %v1842, 0
    %v1906 = vsel %vm284, %v1847, 0
    %v1909 = vsel %vm284, %v1852, 0
    %v1912 = vsel %vm284, %v1857, 0
    %v1915 = vsel %vm284, %v1862, 0
    %1917 = vmatprep.subr.mxu0 0.0
    %1918 = vmatpush1.msra.mxu0 %v1865
    %1919 = vmatprep.subr.mxu0 0.0
    %1920 = vmatpush1.msra.mxu0 %v1866
    %1921 = vmatprep.subr.mxu0 0.0
    %1922 = vmatpush1.msra.mxu0 %v1867
    %1923 = vmatprep.subr.mxu0 0.0
    %1924 = vmatpush1.msra.mxu0 %v1868
    %1925 = vmatprep.subr.mxu0 0.0
    %1926 = vmatpush1.msra.mxu0 0.0
    %1927 = vmatprep.subr.mxu0 0.0
    %1928 = vmatpush1.msra.mxu0 0.0
    %1929 = vmatprep.subr.mxu0 0.0
    %1930 = vmatpush1.msra.mxu0 0.0
    %1931 = vmatprep.subr.mxu0 0.0
    %1932 = vmatpush1.msra.mxu0 0.0
    %1933 = vmatprep.subr.mxu0 0.0
    %1934 = vmatpush1.msra.mxu0 0.0
    %1935 = vmatprep.subr.mxu0 0.0
    %1936 = vmatpush1.msra.mxu0 0.0
    %1937 = vmatprep.subr.mxu0 0.0
    %1938 = vmatpush1.msra.mxu0 0.0
    %1939 = vmatprep.subr.mxu0 0.0
    %1940 = vmatpush1.msra.mxu0 0.0
    %1941 = vmatprep.subr.mxu0 0.0
    %1942 = vmatpush1.msra.mxu0 0.0
    %1943 = vmatprep.subr.mxu0 0.0
    %1944 = vmatpush1.msra.mxu0 0.0
    %1945 = vmatprep.subr.mxu0 0.0
    %1946 = vmatpush1.msra.mxu0 0.0
    %1947 = vmatprep.subr.mxu0 0.0
    %1948 = vmatpush1.msra.mxu0 0.0
    %1949 = vmatprep.subr.mxu0 0.0
    %1950 = vmatpush1.msra.mxu0 0.0
    %1951 = vmatprep.subr.mxu0 0.0
    %1952 = vmatpush1.msra.mxu0 0.0
    %1953 = vmatprep.subr.mxu0 0.0
    %1954 = vmatpush1.msra.mxu0 0.0
    %1955 = vmatprep.subr.mxu0 0.0
    %1956 = vmatpush1.msra.mxu0 0.0
    %1957 = vmatprep.subr.mxu0 0.0
    %1958 = vmatpush1.msra.mxu0 0.0
    %1959 = vmatprep.subr.mxu0 0.0
    %1960 = vmatpush1.msra.mxu0 0.0
    %1961 = vmatprep.subr.mxu0 0.0
    %1962 = vmatpush1.msra.mxu0 0.0
    %1963 = vmatprep.subr.mxu0 0.0
    %1964 = vmatpush1.msra.mxu0 0.0
    %1965 = vmatprep.subr.mxu0 0.0
    %1966 = vmatpush1.msra.mxu0 0.0
    %1967 = vmatprep.subr.mxu0 0.0
    %1968 = vmatpush1.msra.mxu0 0.0
    %1969 = vmatprep.subr.mxu0 0.0
    %1970 = vmatpush1.msra.mxu0 0.0
    %1971 = vmatprep.subr.mxu0 0.0
    %1972 = vmatpush1.msra.mxu0 0.0
    %1973 = vmatprep.subr.mxu0 0.0
    %1974 = vmatpush1.msra.mxu0 0.0
    %1975 = vmatprep.subr.mxu0 0.0
    %1976 = vmatpush1.msra.mxu0 0.0
    %1977 = vmatprep.subr.mxu0 0.0
    %1978 = vmatpush1.msra.mxu0 0.0
    %1979 = vmatprep.subr.mxu0 0.0
    %1980 = vmatpush1.msra.mxu0 0.0
    %1981 = vmatprep.mubr.f32.mxu0 0.0
    %1982 = vmatmul.mubr.f32.gmra.mrb[0].mxu0 %v1882
    %v1983 = vpop.f32.mrb[0].mxu0
    %v1984 = vadd.f32 %v1869, %v1983
    %v1985 = vpop.f32.mrb[0].mxu0
    %1986 = vmatprep.mubr.f32.mxu0 0.0
    %1987 = vmatmul.mubr.f32.gmra.mrb[0].mxu0 %v1885
    %v1988 = vpop.f32.mrb[0].mxu0
    %v1989 = vadd.f32 %v1870, %v1988
    %v1990 = vpop.f32.mrb[0].mxu0
    %1991 = vmatprep.mubr.f32.mxu0 0.0
    %1992 = vmatmul.mubr.f32.gmra.mrb[0].mxu0 %v1888
    %v1993 = vpop.f32.mrb[0].mxu0
    %v1994 = vadd.f32 %v1871, %v1993
    %v1995 = vpop.f32.mrb[0].mxu0
    %1996 = vmatprep.mubr.f32.mxu0 0.0
    %1997 = vmatmul.mubr.f32.gmra.mrb[0].mxu0 %v1891
    %v1998 = vpop.f32.mrb[0].mxu0
    %v1999 = vadd.f32 %v1872, %v1998
    %v2000 = vpop.f32.mrb[0].mxu0
    %2001 = vmatprep.mubr.f32.mxu0 0.0
    %2002 = vmatmul.mubr.f32.gmra.mrb[0].mxu0 %v1894
    %v2003 = vpop.f32.mrb[0].mxu0
    %v2004 = vadd.f32 %v1873, %v2003
    %v2005 = vpop.f32.mrb[0].mxu0
    %2006 = vmatprep.mubr.f32.mxu0 0.0
    %2007 = vmatmul.mubr.f32.gmra.mrb[0].mxu0 %v1897
    %v2008 = vpop.f32.mrb[0].mxu0
    %v2009 = vadd.f32 %v1874, %v2008
    %v2010 = vpop.f32.mrb[0].mxu0
    %2011 = vmatprep.mubr.f32.mxu0 0.0
    %2012 = vmatmul.mubr.f32.gmra.mrb[0].mxu0 %v1900
    %v2013 = vpop.f32.mrb[0].mxu0
    %v2014 = vadd.f32 %v1875, %v2013
    %v2015 = vpop.f32.mrb[0].mxu0
    %2016 = vmatprep.mubr.f32.mxu0 0.0
    %2017 = vmatmul.mubr.f32.gmra.mrb[0].mxu0 %v1903
    %v2018 = vpop.f32.mrb[0].mxu0
    %v2019 = vadd.f32 %v1876, %v2018
    %v2020 = vpop.f32.mrb[0].mxu0
    %2021 = vmatprep.mubr.f32.mxu0 0.0
    %2022 = vmatmul.mubr.f32.gmra.mrb[0].mxu0 %v1906
    %v2023 = vpop.f32.mrb[0].mxu0
    %v2024 = vadd.f32 %v1877, %v2023
    %v2025 = vpop.f32.mrb[0].mxu0
    %2026 = vmatprep.mubr.f32.mxu0 0.0
    %2027 = vmatmul.mubr.f32.gmra.mrb[0].mxu0 %v1909
    %v2028 = vpop.f32.mrb[0].mxu0
    %v2029 = vadd.f32 %v1878, %v2028
    %v2030 = vpop.f32.mrb[0].mxu0
    %2031 = vmatprep.mubr.f32.mxu0 0.0
    %2032 = vmatmul.mubr.f32.gmra.mrb[0].mxu0 %v1912
    %v2033 = vpop.f32.mrb[0].mxu0
    %v2034 = vadd.f32 %v1879, %v2033
    %v2035 = vpop.f32.mrb[0].mxu0
    %2036 = vmatprep.mubr.f32.mxu0 0.0
    %2037 = vmatmul.mubr.f32.gmra.mrb[0].mxu0 %v1915
    %v2038 = vpop.f32.mrb[0].mxu0
    %v2039 = vadd.f32 %v1880, %v2038
    %v2040 = vpop.f32.mrb[0].mxu0
    %2041 = vdwg.mxu0
    %v2042 = vmax.f32 %v1984, 0.0
    %v2043 = vmax.f32 %v1989, 0.0
    %v2044 = vmax.f32 %v1994, 0.0
    %v2045 = vmax.f32 %v1999, 0.0
    %v2046 = vmax.f32 %v2004, 0.0
    %v2047 = vmax.f32 %v2009, 0.0
    %v2048 = vmax.f32 %v2014, 0.0
    %v2049 = vmax.f32 %v2019, 0.0
    %v2050 = vmax.f32 %v2024, 0.0
    %v2051 = vmax.f32 %v2029, 0.0
    %v2052 = vmax.f32 %v2034, 0.0
    %v2053 = vmax.f32 %v2039, 0.0
    %v2054 = vld [vmem:[%s16] sm:$0xff]
    %v2055 = vld [vmem:[%s16 + $0x8] sm:$0xff]
    %v2056 = vld [vmem:[%s16 + $0x10] sm:$0xff]
    %v2057 = vld [vmem:[%s16 + $0x18] sm:$0xff]
    %v2058 = vld [vmem:[%s17] sm:$0x1]
    %v2060 = vlaneseq
    %v2061 = vshrl.u32 %v2060, 7
    %v2062 = vsub.s32 0, %v2061
    %v2063 = vrot.slane %v2058, %v2062
    %v2066 = vsel %vm284, %v2042, 0
    %v2069 = vsel %vm284, %v2043, 0
    %v2072 = vsel %vm284, %v2044, 0
    %v2075 = vsel %vm284, %v2045, 0
    %v2078 = vsel %vm284, %v2046, 0
    %v2081 = vsel %vm284, %v2047, 0
    %v2084 = vsel %vm284, %v2048, 0
    %v2087 = vsel %vm284, %v2049, 0
    %v2090 = vsel %vm284, %v2050, 0
    %v2093 = vsel %vm284, %v2051, 0
    %v2096 = vsel %vm284, %v2052, 0
    %v2099 = vsel %vm284, %v2053, 0
    %2101 = vmatprep.subr.mxu0 0.0
    %2102 = vmatpush1.msra.mxu0 %v2054
    %2103 = vmatprep.subr.mxu0 0.0
    %2104 = vmatpush1.msra.mxu0 %v2055
    %2105 = vmatprep.subr.mxu0 0.0
    %2106 = vmatpush1.msra.mxu0 %v2056
    %2107 = vmatprep.subr.mxu0 0.0
    %2108 = vmatpush1.msra.mxu0 %v2057
    %2109 = vmatprep.subr.mxu0 0.0
    %2110 = vmatpush1.msra.mxu0 0.0
    %2111 = vmatprep.subr.mxu0 0.0
    %2112 = vmatpush1.msra.mxu0 0.0
    %2113 = vmatprep.subr.mxu0 0.0
    %2114 = vmatpush1.msra.mxu0 0.0
    %2115 = vmatprep.subr.mxu0 0.0
    %2116 = vmatpush1.msra.mxu0 0.0
    %2117 = vmatprep.subr.mxu0 0.0
    %2118 = vmatpush1.msra.mxu0 0.0
    %2119 = vmatprep.subr.mxu0 0.0
    %2120 = vmatpush1.msra.mxu0 0.0
    %2121 = vmatprep.subr.mxu0 0.0
    %2122 = vmatpush1.msra.mxu0 0.0
    %2123 = vmatprep.subr.mxu0 0.0
    %2124 = vmatpush1.msra.mxu0 0.0
    %2125 = vmatprep.subr.mxu0 0.0
    %2126 = vmatpush1.msra.mxu0 0.0
    %2127 = vmatprep.subr.mxu0 0.0
    %2128 = vmatpush1.msra.mxu0 0.0
    %2129 = vmatprep.subr.mxu0 0.0
    %2130 = vmatpush1.msra.mxu0 0.0
    %2131 = vmatprep.subr.mxu0 0.0
    %2132 = vmatpush1.msra.mxu0 0.0
    %2133 = vmatprep.subr.mxu0 0.0
    %2134 = vmatpush1.msra.mxu0 0.0
    %2135 = vmatprep.subr.mxu0 0.0
    %2136 = vmatpush1.msra.mxu0 0.0
    %2137 = vmatprep.subr.mxu0 0.0
    %2138 = vmatpush1.msra.mxu0 0.0
    %2139 = vmatprep.subr.mxu0 0.0
    %2140 = vmatpush1.msra.mxu0 0.0
    %2141 = vmatprep.subr.mxu0 0.0
    %2142 = vmatpush1.msra.mxu0 0.0
    %2143 = vmatprep.subr.mxu0 0.0
    %2144 = vmatpush1.msra.mxu0 0.0
    %2145 = vmatprep.subr.mxu0 0.0
    %2146 = vmatpush1.msra.mxu0 0.0
    %2147 = vmatprep.subr.mxu0 0.0
    %2148 = vmatpush1.msra.mxu0 0.0
    %2149 = vmatprep.subr.mxu0 0.0
    %2150 = vmatpush1.msra.mxu0 0.0
    %2151 = vmatprep.subr.mxu0 0.0
    %2152 = vmatpush1.msra.mxu0 0.0
    %2153 = vmatprep.subr.mxu0 0.0
    %2154 = vmatpush1.msra.mxu0 0.0
    %2155 = vmatprep.subr.mxu0 0.0
    %2156 = vmatpush1.msra.mxu0 0.0
    %2157 = vmatprep.subr.mxu0 0.0
    %2158 = vmatpush1.msra.mxu0 0.0
    %2159 = vmatprep.subr.mxu0 0.0
    %2160 = vmatpush1.msra.mxu0 0.0
    %2161 = vmatprep.subr.mxu0 0.0
    %2162 = vmatpush1.msra.mxu0 0.0
    %2163 = vmatprep.subr.mxu0 0.0
    %2164 = vmatpush1.msra.mxu0 0.0
    %2165 = vmatprep.mubr.f32.mxu0 0.0
    %2166 = vmatmul.mubr.f32.gmra.mrb[0].mxu0 %v2066
    %v2167 = vpop.f32.mrb[0].mxu0
    %v2168 = vadd.f32 %v2063, %v2167
    %v2169 = vpop.f32.mrb[0].mxu0
    %2170 = vmatprep.mubr.f32.mxu0 0.0
    %2171 = vmatmul.mubr.f32.gmra.mrb[0].mxu0 %v2069
    %v2172 = vpop.f32.mrb[0].mxu0
    %v2173 = vadd.f32 %v2063, %v2172
    %v2174 = vpop.f32.mrb[0].mxu0
    %2175 = vmatprep.mubr.f32.mxu0 0.0
    %2176 = vmatmul.mubr.f32.gmra.mrb[0].mxu0 %v2072
    %v2177 = vpop.f32.mrb[0].mxu0
    %v2178 = vadd.f32 %v2063, %v2177
    %v2179 = vpop.f32.mrb[0].mxu0
    %2180 = vmatprep.mubr.f32.mxu0 0.0
    %2181 = vmatmul.mubr.f32.gmra.mrb[0].mxu0 %v2075
    %v2182 = vpop.f32.mrb[0].mxu0
    %v2183 = vadd.f32 %v2063, %v2182
    %v2184 = vpop.f32.mrb[0].mxu0
    %2185 = vmatprep.mubr.f32.mxu0 0.0
    %2186 = vmatmul.mubr.f32.gmra.mrb[0].mxu0 %v2078
    %v2187 = vpop.f32.mrb[0].mxu0
    %v2188 = vadd.f32 %v2063, %v2187
    %v2189 = vpop.f32.mrb[0].mxu0
    %2190 = vmatprep.mubr.f32.mxu0 0.0
    %2191 = vmatmul.mubr.f32.gmra.mrb[0].mxu0 %v2081
    %v2192 = vpop.f32.mrb[0].mxu0
    %v2193 = vadd.f32 %v2063, %v2192
    %v2194 = vpop.f32.mrb[0].mxu0
    %2195 = vmatprep.mubr.f32.mxu0 0.0
    %2196 = vmatmul.mubr.f32.gmra.mrb[0].mxu0 %v2084
    %v2197 = vpop.f32.mrb[0].mxu0
    %v2198 = vadd.f32 %v2063, %v2197
    %v2199 = vpop.f32.mrb[0].mxu0
    %2200 = vmatprep.mubr.f32.mxu0 0.0
    %2201 = vmatmul.mubr.f32.gmra.mrb[0].mxu0 %v2087
    %v2202 = vpop.f32.mrb[0].mxu0
    %v2203 = vadd.f32 %v2063, %v2202
    %v2204 = vpop.f32.mrb[0].mxu0
    %2205 = vmatprep.mubr.f32.mxu0 0.0
    %2206 = vmatmul.mubr.f32.gmra.mrb[0].mxu0 %v2090
    %v2207 = vpop.f32.mrb[0].mxu0
    %v2208 = vadd.f32 %v2063, %v2207
    %v2209 = vpop.f32.mrb[0].mxu0
    %2210 = vmatprep.mubr.f32.mxu0 0.0
    %2211 = vmatmul.mubr.f32.gmra.mrb[0].mxu0 %v2093
    %v2212 = vpop.f32.mrb[0].mxu0
    %v2213 = vadd.f32 %v2063, %v2212
    %v2214 = vpop.f32.mrb[0].mxu0
    %2215 = vmatprep.mubr.f32.mxu0 0.0
    %2216 = vmatmul.mubr.f32.gmra.mrb[0].mxu0 %v2096
    %v2217 = vpop.f32.mrb[0].mxu0
    %v2218 = vadd.f32 %v2063, %v2217
    %v2219 = vpop.f32.mrb[0].mxu0
    %2220 = vmatprep.mubr.f32.mxu0 0.0
    %2221 = vmatmul.mubr.f32.gmra.mrb[0].mxu0 %v2099
    %v2222 = vpop.f32.mrb[0].mxu0
    %v2223 = vadd.f32 %v2063, %v2222
    %v2224 = vpop.f32.mrb[0].mxu0
    %2225 = vdwg.mxu0
    %v2226 = vmax.f32 %v2168, 0.0
    %v2227 = vmax.f32 %v2173, 0.0
    %v2228 = vmax.f32 %v2178, 0.0
    %v2229 = vmax.f32 %v2183, 0.0
    %v2230 = vmax.f32 %v2188, 0.0
    %v2231 = vmax.f32 %v2193, 0.0
    %v2232 = vmax.f32 %v2198, 0.0
    %v2233 = vmax.f32 %v2203, 0.0
    %v2234 = vmax.f32 %v2208, 0.0
    %v2235 = vmax.f32 %v2213, 0.0
    %v2236 = vmax.f32 %v2218, 0.0
    %v2237 = vmax.f32 %v2223, 0.0
    %v2238 = vld [vmem:[%s18] sm:$0xff]
    %v2239 = vld [vmem:[%s18 + $0x8] sm:$0xff]
    %v2240 = vld [vmem:[%s18 + $0x10] sm:$0xff]
    %v2241 = vld [vmem:[%s18 + $0x18] sm:$0xff]
    %v2242 = vld [vmem:[%s19] sm:$0x1]
    %v2244 = vlaneseq
    %v2245 = vshrl.u32 %v2244, 7
    %v2246 = vsub.s32 0, %v2245
    %v2247 = vrot.slane %v2242, %v2246
    %v2250 = vsel %vm284, %v2226, 0
    %v2253 = vsel %vm284, %v2227, 0
    %v2256 = vsel %vm284, %v2228, 0
    %v2259 = vsel %vm284, %v2229, 0
    %v2262 = vsel %vm284, %v2230, 0
    %v2265 = vsel %vm284, %v2231, 0
    %v2268 = vsel %vm284, %v2232, 0
    %v2271 = vsel %vm284, %v2233, 0
    %v2274 = vsel %vm284, %v2234, 0
    %v2277 = vsel %vm284, %v2235, 0
    %v2280 = vsel %vm284, %v2236, 0
    %v2283 = vsel %vm284, %v2237, 0
    %2285 = vmatprep.subr.mxu0 0.0
    %2286 = vmatpush1.msra.mxu0 %v2238
    %2287 = vmatprep.subr.mxu0 0.0
    %2288 = vmatpush1.msra.mxu0 %v2239
    %2289 = vmatprep.subr.mxu0 0.0
    %2290 = vmatpush1.msra.mxu0 %v2240
    %2291 = vmatprep.subr.mxu0 0.0
    %2292 = vmatpush1.msra.mxu0 %v2241
    %2293 = vmatprep.subr.mxu0 0.0
    %2294 = vmatpush1.msra.mxu0 0.0
    %2295 = vmatprep.subr.mxu0 0.0
    %2296 = vmatpush1.msra.mxu0 0.0
    %2297 = vmatprep.subr.mxu0 0.0
    %2298 = vmatpush1.msra.mxu0 0.0
    %2299 = vmatprep.subr.mxu0 0.0
    %2300 = vmatpush1.msra.mxu0 0.0
    %2301 = vmatprep.subr.mxu0 0.0
    %2302 = vmatpush1.msra.mxu0 0.0
    %2303 = vmatprep.subr.mxu0 0.0
    %2304 = vmatpush1.msra.mxu0 0.0
    %2305 = vmatprep.subr.mxu0 0.0
    %2306 = vmatpush1.msra.mxu0 0.0
    %2307 = vmatprep.subr.mxu0 0.0
    %2308 = vmatpush1.msra.mxu0 0.0
    %2309 = vmatprep.subr.mxu0 0.0
    %2310 = vmatpush1.msra.mxu0 0.0
    %2311 = vmatprep.subr.mxu0 0.0
    %2312 = vmatpush1.msra.mxu0 0.0
    %2313 = vmatprep.subr.mxu0 0.0
    %2314 = vmatpush1.msra.mxu0 0.0
    %2315 = vmatprep.subr.mxu0 0.0
    %2316 = vmatpush1.msra.mxu0 0.0
    %2317 = vmatprep.subr.mxu0 0.0
    %2318 = vmatpush1.msra.mxu0 0.0
    %2319 = vmatprep.subr.mxu0 0.0
    %2320 = vmatpush1.msra.mxu0 0.0
    %2321 = vmatprep.subr.mxu0 0.0
    %2322 = vmatpush1.msra.mxu0 0.0
    %2323 = vmatprep.subr.mxu0 0.0
    %2324 = vmatpush1.msra.mxu0 0.0
    %2325 = vmatprep.subr.mxu0 0.0
    %2326 = vmatpush1.msra.mxu0 0.0
    %2327 = vmatprep.subr.mxu0 0.0
    %2328 = vmatpush1.msra.mxu0 0.0
    %2329 = vmatprep.subr.mxu0 0.0
    %2330 = vmatpush1.msra.mxu0 0.0
    %2331 = vmatprep.subr.mxu0 0.0
    %2332 = vmatpush1.msra.mxu0 0.0
    %2333 = vmatprep.subr.mxu0 0.0
    %2334 = vmatpush1.msra.mxu0 0.0
    %2335 = vmatprep.subr.mxu0 0.0
    %2336 = vmatpush1.msra.mxu0 0.0
    %2337 = vmatprep.subr.mxu0 0.0
    %2338 = vmatpush1.msra.mxu0 0.0
    %2339 = vmatprep.subr.mxu0 0.0
    %2340 = vmatpush1.msra.mxu0 0.0
    %2341 = vmatprep.subr.mxu0 0.0
    %2342 = vmatpush1.msra.mxu0 0.0
    %2343 = vmatprep.subr.mxu0 0.0
    %2344 = vmatpush1.msra.mxu0 0.0
    %2345 = vmatprep.subr.mxu0 0.0
    %2346 = vmatpush1.msra.mxu0 0.0
    %2347 = vmatprep.subr.mxu0 0.0
    %2348 = vmatpush1.msra.mxu0 0.0
    %2349 = vmatprep.mubr.f32.mxu0 0.0
    %2350 = vmatmul.mubr.f32.gmra.mrb[0].mxu0 %v2250
    %v2351 = vpop.f32.mrb[0].mxu0
    %v2352 = vadd.f32 %v2247, %v2351
    %v2353 = vpop.f32.mrb[0].mxu0
    %2354 = vmatprep.mubr.f32.mxu0 0.0
    %2355 = vmatmul.mubr.f32.gmra.mrb[0].mxu0 %v2253
    %v2356 = vpop.f32.mrb[0].mxu0
    %v2357 = vadd.f32 %v2247, %v2356
    %v2358 = vpop.f32.mrb[0].mxu0
    %2359 = vmatprep.mubr.f32.mxu0 0.0
    %2360 = vmatmul.mubr.f32.gmra.mrb[0].mxu0 %v2256
    %v2361 = vpop.f32.mrb[0].mxu0
    %v2362 = vadd.f32 %v2247, %v2361
    %v2363 = vpop.f32.mrb[0].mxu0
    %2364 = vmatprep.mubr.f32.mxu0 0.0
    %2365 = vmatmul.mubr.f32.gmra.mrb[0].mxu0 %v2259
    %v2366 = vpop.f32.mrb[0].mxu0
    %v2367 = vadd.f32 %v2247, %v2366
    %v2368 = vpop.f32.mrb[0].mxu0
    %2369 = vmatprep.mubr.f32.mxu0 0.0
    %2370 = vmatmul.mubr.f32.gmra.mrb[0].mxu0 %v2262
    %v2371 = vpop.f32.mrb[0].mxu0
    %v2372 = vadd.f32 %v2247, %v2371
    %v2373 = vpop.f32.mrb[0].mxu0
    %2374 = vmatprep.mubr.f32.mxu0 0.0
    %2375 = vmatmul.mubr.f32.gmra.mrb[0].mxu0 %v2265
    %v2376 = vpop.f32.mrb[0].mxu0
    %v2377 = vadd.f32 %v2247, %v2376
    %v2378 = vpop.f32.mrb[0].mxu0
    %2379 = vmatprep.mubr.f32.mxu0 0.0
    %2380 = vmatmul.mubr.f32.gmra.mrb[0].mxu0 %v2268
    %v2381 = vpop.f32.mrb[0].mxu0
    %v2382 = vadd.f32 %v2247, %v2381
    %v2383 = vpop.f32.mrb[0].mxu0
    %2384 = vmatprep.mubr.f32.mxu0 0.0
    %2385 = vmatmul.mubr.f32.gmra.mrb[0].mxu0 %v2271
    %v2386 = vpop.f32.mrb[0].mxu0
    %v2387 = vadd.f32 %v2247, %v2386
    %v2388 = vpop.f32.mrb[0].mxu0
    %2389 = vmatprep.mubr.f32.mxu0 0.0
    %2390 = vmatmul.mubr.f32.gmra.mrb[0].mxu0 %v2274
    %v2391 = vpop.f32.mrb[0].mxu0
    %v2392 = vadd.f32 %v2247, %v2391
    %v2393 = vpop.f32.mrb[0].mxu0
    %2394 = vmatprep.mubr.f32.mxu0 0.0
    %2395 = vmatmul.mubr.f32.gmra.mrb[0].mxu0 %v2277
    %v2396 = vpop.f32.mrb[0].mxu0
    %v2397 = vadd.f32 %v2247, %v2396
    %v2398 = vpop.f32.mrb[0].mxu0
    %2399 = vmatprep.mubr.f32.mxu0 0.0
    %2400 = vmatmul.mubr.f32.gmra.mrb[0].mxu0 %v2280
    %v2401 = vpop.f32.mrb[0].mxu0
    %v2402 = vadd.f32 %v2247, %v2401
    %v2403 = vpop.f32.mrb[0].mxu0
    %2404 = vmatprep.mubr.f32.mxu0 0.0
    %2405 = vmatmul.mubr.f32.gmra.mrb[0].mxu0 %v2283
    %v2406 = vpop.f32.mrb[0].mxu0
    %v2407 = vadd.f32 %v2247, %v2406
    %v2408 = vpop.f32.mrb[0].mxu0
    %2409 = vdwg.mxu0
    %v2410 = vmax.f32 %v2352, %v2372
    %v2411 = vmax.f32 %v2357, %v2377
    %v2412 = vmax.f32 %v2362, %v2382
    %v2413 = vmax.f32 %v2367, %v2387
    %v2414 = vmax.f32 %v2410, %v2392
    %v2415 = vmax.f32 %v2411, %v2397
    %v2416 = vmax.f32 %v2412, %v2402
    %v2417 = vmax.f32 %v2413, %v2407
    %v2418 = vadd.f32 %v588, %v1264
    %v2419 = vadd.f32 %v589, %v1269
    %v2420 = vadd.f32 %v590, %v1274
    %v2421 = vadd.f32 %v591, %v1279
    %v2422 = vadd.f32 %v2418, %v2414
    %v2423 = vadd.f32 %v2419, %v2415
    %v2424 = vadd.f32 %v2420, %v2416
    %v2425 = vadd.f32 %v2421, %v2417
    %v2426 = vmax.f32 %v2422, 0.0
    %v2427 = vmax.f32 %v2423, 0.0
    %v2428 = vmax.f32 %v2424, 0.0
    %v2429 = vmax.f32 %v2425, 0.0
    %v2430 = vld [vmem:[%s4] sm:$0x3]
    %v2432 = vsel %vm284, %v2430, 0
    %2434 = vmatprep.subr.mxu0 0.0
    %2435 = vmatpush1.msra.mxu0 %v2426
    %2436 = vmatprep.subr.mxu0 0.0
    %2437 = vmatpush1.msra.mxu0 %v2427
    %2438 = vmatprep.subr.mxu0 0.0
    %2439 = vmatpush1.msra.mxu0 %v2428
    %2440 = vmatprep.subr.mxu0 0.0
    %2441 = vmatpush1.msra.mxu0 %v2429
    %2442 = vmatprep.subr.mxu0 0.0
    %2443 = vmatpush1.msra.mxu0 0.0
    %2444 = vmatprep.subr.mxu0 0.0
    %2445 = vmatpush1.msra.mxu0 0.0
    %2446 = vmatprep.subr.mxu0 0.0
    %2447 = vmatpush1.msra.mxu0 0.0
    %2448 = vmatprep.subr.mxu0 0.0
    %2449 = vmatpush1.msra.mxu0 0.0
    %2450 = vmatprep.subr.mxu0 0.0
    %2451 = vmatpush1.msra.mxu0 0.0
    %2452 = vmatprep.subr.mxu0 0.0
    %2453 = vmatpush1.msra.mxu0 0.0
    %2454 = vmatprep.subr.mxu0 0.0
    %2455 = vmatpush1.msra.mxu0 0.0
    %2456 = vmatprep.subr.mxu0 0.0
    %2457 = vmatpush1.msra.mxu0 0.0
    %2458 = vmatprep.subr.mxu0 0.0
    %2459 = vmatpush1.msra.mxu0 0.0
    %2460 = vmatprep.subr.mxu0 0.0
    %2461 = vmatpush1.msra.mxu0 0.0
    %2462 = vmatprep.subr.mxu0 0.0
    %2463 = vmatpush1.msra.mxu0 0.0
    %2464 = vmatprep.subr.mxu0 0.0
    %2465 = vmatpush1.msra.mxu0 0.0
    %2466 = vmatprep.subr.mxu0 0.0
    %2467 = vmatpush1.msra.mxu0 0.0
    %2468 = vmatprep.subr.mxu0 0.0
    %2469 = vmatpush1.msra.mxu0 0.0
    %2470 = vmatprep.subr.mxu0 0.0
    %2471 = vmatpush1.msra.mxu0 0.0
    %2472 = vmatprep.subr.mxu0 0.0
    %2473 = vmatpush1.msra.mxu0 0.0
    %2474 = vmatprep.subr.mxu0 0.0
    %2475 = vmatpush1.msra.mxu0 0.0
    %2476 = vmatprep.subr.mxu0 0.0
    %2477 = vmatpush1.msra.mxu0 0.0
    %2478 = vmatprep.subr.mxu0 0.0
    %2479 = vmatpush1.msra.mxu0 0.0
    %2480 = vmatprep.subr.mxu0 0.0
    %2481 = vmatpush1.msra.mxu0 0.0
    %2482 = vmatprep.subr.mxu0 0.0
    %2483 = vmatpush1.msra.mxu0 0.0
    %2484 = vmatprep.subr.mxu0 0.0
    %2485 = vmatpush1.msra.mxu0 0.0
    %2486 = vmatprep.subr.mxu0 0.0
    %2487 = vmatpush1.msra.mxu0 0.0
    %2488 = vmatprep.subr.mxu0 0.0
    %2489 = vmatpush1.msra.mxu0 0.0
    %2490 = vmatprep.subr.mxu0 0.0
    %2491 = vmatpush1.msra.mxu0 0.0
    %2492 = vmatprep.subr.mxu0 0.0
    %2493 = vmatpush1.msra.mxu0 0.0
    %2494 = vmatprep.subr.mxu0 0.0
    %2495 = vmatpush1.msra.mxu0 0.0
    %2496 = vmatprep.subr.mxu0 0.0
    %2497 = vmatpush1.msra.mxu0 0.0
    %2498 = vmatprep.mubr.f32.mxu0 0.0
    %2499 = vmatmul.mubr.f32.gmra.mrb[0].mxu0 %v2432
    %v2500 = vpop.f32.mrb[0].mxu0
    %v2501 = vadd.f32 0.0, %v2500
    %v2502 = vpop.f32.mrb[0].mxu0
    %2503 = vdwg.mxu0
    %v2504 = vld [vmem:[%s20] sm:$0xff]
    %v2505 = vld [vmem:[%s20 + $0x8] sm:$0xff]
    %v2506 = vld [vmem:[%s20 + $0x10] sm:$0xff]
    %v2507 = vld [vmem:[%s20 + $0x18] sm:$0xff]
    %v2508 = vld [vmem:[%s21] sm:$0x1]
    %v2510 = vlaneseq
    %v2511 = vshrl.u32 %v2510, 7
    %v2512 = vsub.s32 0, %v2511
    %v2513 = vrot.slane %v2508, %v2512
    %v2516 = vsel %vm284, %v2501, 0
    %2518 = vmatprep.subr.mxu0 0.0
    %2519 = vmatpush1.msra.mxu0 %v2504
    %2520 = vmatprep.subr.mxu0 0.0
    %2521 = vmatpush1.msra.mxu0 %v2505
    %2522 = vmatprep.subr.mxu0 0.0
    %2523 = vmatpush1.msra.mxu0 %v2506
    %2524 = vmatprep.subr.mxu0 0.0
    %2525 = vmatpush1.msra.mxu0 %v2507
    %2526 = vmatprep.subr.mxu0 0.0
    %2527 = vmatpush1.msra.mxu0 0.0
    %2528 = vmatprep.subr.mxu0 0.0
    %2529 = vmatpush1.msra.mxu0 0.0
    %2530 = vmatprep.subr.mxu0 0.0
    %2531 = vmatpush1.msra.mxu0 0.0
    %2532 = vmatprep.subr.mxu0 0.0
    %2533 = vmatpush1.msra.mxu0 0.0
    %2534 = vmatprep.subr.mxu0 0.0
    %2535 = vmatpush1.msra.mxu0 0.0
    %2536 = vmatprep.subr.mxu0 0.0
    %2537 = vmatpush1.msra.mxu0 0.0
    %2538 = vmatprep.subr.mxu0 0.0
    %2539 = vmatpush1.msra.mxu0 0.0
    %2540 = vmatprep.subr.mxu0 0.0
    %2541 = vmatpush1.msra.mxu0 0.0
    %2542 = vmatprep.subr.mxu0 0.0
    %2543 = vmatpush1.msra.mxu0 0.0
    %2544 = vmatprep.subr.mxu0 0.0
    %2545 = vmatpush1.msra.mxu0 0.0
    %2546 = vmatprep.subr.mxu0 0.0
    %2547 = vmatpush1.msra.mxu0 0.0
    %2548 = vmatprep.subr.mxu0 0.0
    %2549 = vmatpush1.msra.mxu0 0.0
    %2550 = vmatprep.subr.mxu0 0.0
    %2551 = vmatpush1.msra.mxu0 0.0
    %2552 = vmatprep.subr.mxu0 0.0
    %2553 = vmatpush1.msra.mxu0 0.0
    %2554 = vmatprep.subr.mxu0 0.0
    %2555 = vmatpush1.msra.mxu0 0.0
    %2556 = vmatprep.subr.mxu0 0.0
    %2557 = vmatpush1.msra.mxu0 0.0
    %2558 = vmatprep.subr.mxu0 0.0
    %2559 = vmatpush1.msra.mxu0 0.0
    %2560 = vmatprep.subr.mxu0 0.0
    %2561 = vmatpush1.msra.mxu0 0.0
    %2562 = vmatprep.subr.mxu0 0.0
    %2563 = vmatpush1.msra.mxu0 0.0
    %2564 = vmatprep.subr.mxu0 0.0
    %2565 = vmatpush1.msra.mxu0 0.0
    %2566 = vmatprep.subr.mxu0 0.0
    %2567 = vmatpush1.msra.mxu0 0.0
    %2568 = vmatprep.subr.mxu0 0.0
    %2569 = vmatpush1.msra.mxu0 0.0
    %2570 = vmatprep.subr.mxu0 0.0
    %2571 = vmatpush1.msra.mxu0 0.0
    %2572 = vmatprep.subr.mxu0 0.0
    %2573 = vmatpush1.msra.mxu0 0.0
    %2574 = vmatprep.subr.mxu0 0.0
    %2575 = vmatpush1.msra.mxu0 0.0
    %2576 = vmatprep.subr.mxu0 0.0
    %2577 = vmatpush1.msra.mxu0 0.0
    %2578 = vmatprep.subr.mxu0 0.0
    %2579 = vmatpush1.msra.mxu0 0.0
    %2580 = vmatprep.subr.mxu0 0.0
    %2581 = vmatpush1.msra.mxu0 0.0
    %2582 = vmatprep.mubr.f32.mxu0 0.0
    %2583 = vmatmul.mubr.f32.gmra.mrb[0].mxu0 %v2516
    %v2584 = vpop.f32.mrb[0].mxu0
    %v2585 = vadd.f32 %v2513, %v2584
    %v2586 = vpop.f32.mrb[0].mxu0
    %2587 = vdwg.mxu0
    %vm2588 = vcmask 33792
    %2589 = vst.msk [vmem:[#allocation4] sm:$0x3] %vm2588, %v2585
    // Predicated region
    $region90: #{stgcn_forward.1} parent=1 // pred_check
      _
    $region91: #{stgcn_forward.1} parent=1 // pred_check_branch
      %2591 = sbr.rel (0) target = $region93
    $region92: #{stgcn_forward.1} parent=1 // pred_region
      %s2593 = ssub.s32 32, 32
      %2594 = vsyncadd [#allocation5], %s2593
      %s2596 = sshll.u32 [#allocation4], 4
      %s2597 = int_to_ptr.vmem [resolvable:$true] %s2596
      %2599 = dma.vmem_to_hbm [thread:$0]  %s2597, 32, %s22, [#allocation5]
    $region93: #{stgcn_forward.1} parent=1 // pred_fallthru
      _
    // Predicated region
    $region94: #{stgcn_forward.1} parent=1 // pred_check
      _
    $region95: #{stgcn_forward.1} parent=1 // pred_check_branch
      %2601 = sbr.rel (0) target = $region97
    $region96: #{stgcn_forward.1} parent=1 // pred_region
      %2602 = dma.done [#allocation5], 32
    $region97: #{stgcn_forward.1} parent=1 // pred_fallthru
      _
    %2603 = vsyncpa [#allocation5], 1

</llo_original>
